<compile_context>
chip_gen: v7x
topology: tpu7x:2x2x1
jax: 0.10.0
libtpu: 0.0.40
codegen_flags: <defaults>
</compile_context>

<pallas_src>
import math

import jax
import jax.numpy as jnp
import numpy as np
from jax.experimental import pallas as pl
from jax.experimental.pallas import tpu as pltpu


def _make_kernel(Bt, M, C, H, matmul_dtype):
    def kernel(x_ref, wq_ref, bq_ref, wk_ref, bk_ref, ehs_ref, ehb_ref, o_ref):
        x = x_ref[...]                                  # (Bt, M, C)
        xf = x.astype(jnp.float32)                      # v / softmax path stays f32

        # --- projections: (bf16|f32) MXU operands, f32 accumulation ----------
        xm = jnp.mean(xf, axis=1)                       # (Bt, C) exact mean in f32
        q = jnp.dot(xm.astype(matmul_dtype), wq_ref[...],
                    preferred_element_type=jnp.float32) + bq_ref[...]       # (Bt, C)
        x2 = x.astype(matmul_dtype).reshape(Bt * M, C)
        k2 = jnp.dot(x2, wk_ref[...],
                     preferred_element_type=jnp.float32) + bk_ref[...]      # (Bt*M, C)

        # --- attention scores: lane-dense VPU product + selector matmul ------
        # qk[b,m,c] = q[b,c]*k[b,m,c]; the per-head sum over each head's D lanes
        # is one matmul with the constant (C, H) 0/1 selector (1/sqrt(D) folded
        # in). Implicit broadcast of q: no materialized (Bt*M, C) temp.
        qk = k2.reshape(Bt, M, C) * q[:, None, :]                           # (Bt, M, C)
        s3 = jnp.dot(qk.reshape(Bt * M, C), ehs_ref[...],
                     preferred_element_type=jnp.float32).reshape(Bt, M, H)

        # softmax over tokens (axis=1) per (batch, head) — exact f32 divide
        # (the approx EUP reciprocal caused the previous ~1e-3 mismatch).
        s3 = s3 - jnp.max(s3, axis=1, keepdims=True)
        p3 = jnp.exp(s3)
        p3 = p3 / jnp.sum(p3, axis=1, keepdims=True)

        # --- weighted sum of v (= raw x, f32) --------------------------------
        # Broadcast head weights back to C lanes with the (H, C) selector, one
        # lane-dense multiply + token reduce, single full-row store per block.
        pw = jnp.dot(p3.reshape(Bt * M, H), ehb_ref[...],
                     preferred_element_type=jnp.float32).reshape(Bt, M, C)
        o_ref[...] = jnp.sum(pw * xf, axis=1)                               # (Bt, C)

    return kernel


def _pick_block_b(B_pad, M, C, x_itemsize, *, vmem_budget_bytes):
    """Batch rows per grid step.

    B_pad is a multiple of 8. Picks the largest multiple-of-8 divisor of B_pad
    such that the double-buffered (Bt, M, C) x block fits `vmem_budget_bytes`
    (conservative 8 MiB default — fits v5e's 16 MiB scoped VMEM default), and
    caps Bt <= B_pad // 2 whenever B_pad >= 16 so the grid keeps >= 2 steps
    (v7x dual-TensorCore / megacore sharding of the "parallel" axis)."""
    assert B_pad % 8 == 0
    max_bt_rows = max(8, vmem_budget_bytes // max(1, 2 * M * C * x_itemsize))
    max_bt = B_pad if B_pad < 16 else B_pad // 2
    best = 8
    cand = 8
    while cand <= max_bt:
        if B_pad % cand == 0 and cand <= max_bt_rows:
            best = cand
        cand += 8
    return best


def mhsa_pallas(x, wq_t, bq, wk_t, bk, head_num, *,
                matmul_dtype=jnp.bfloat16, vmem_budget_bytes=8 << 20):
    """x: (B, M, C) float32; wq_t/wk_t: (C, C) pre-transposed; bq/bk: (C,)."""
    B, M, C = x.shape
    H = head_num
    D = C // H
    assert C == H * D, "out_channels must be divisible by head_num"

    # Pad batch to a multiple of 8 (zero rows, sliced off below) so the (Bt, C)
    # output block is always sublane aligned regardless of B.
    B_pad = -(-B // 8) * 8
    if B_pad != B:
        x = jnp.pad(x, ((0, B_pad - B), (0, 0), (0, 0)))

    x_itemsize = jnp.dtype(x.dtype).itemsize
    Bt = _pick_block_b(B_pad, M, C, x_itemsize, vmem_budget_bytes=vmem_budget_bytes)
    grid = (B_pad // Bt,)

    # MXU operands: weights pre-cast in the wrapper (smaller DMA); biases f32.
    wq_c = wq_t.astype(matmul_dtype)
    wk_c = wk_t.astype(matmul_dtype)
    bq2 = bq.reshape(1, C).astype(jnp.float32)
    bk2 = bk.reshape(1, C).astype(jnp.float32)

    # Constant head-selector matrices (built once in the wrapper):
    #   ehs[c, h] = 1/sqrt(D) if c // D == h else 0   (segment-sum of scores)
    #   ehb[h, c] = 1          if c // D == h else 0  (head -> channel bcast)
    head_of_c = jnp.arange(C, dtype=jnp.int32) // D
    eh = (head_of_c[:, None] == jnp.arange(H, dtype=jnp.int32)[None, :]).astype(jnp.float32)
    ehs = eh * (1.0 / math.sqrt(D))     # (C, H)
    ehb = eh.T                          # (H, C)

    # VMEM accounting -> compiler limit with headroom (below v7x 64 MiB phys).
    w_itemsize = jnp.dtype(matmul_dtype).itemsize
    x_block_bytes = Bt * M * C * x_itemsize
    o_block_bytes = Bt * C * 4
    const_bytes = 2 * C * C * w_itemsize + 2 * C * 4 + 2 * C * H * 4
    footprint = 2 * x_block_bytes + 2 * o_block_bytes + 2 * const_bytes
    vmem_limit = int(min(48 << 20, max(16 << 20, 2 * footprint)))

    flops = 2 * B_pad * C * C * (M + 1) + 4 * B_pad * M * C * H + 6 * B_pad * M * C
    bytes_accessed = (B_pad * M * C * x_itemsize + 2 * C * C * w_itemsize
                      + 4 * C * 4 + 2 * C * H * 4 + B_pad * C * 4)
    cost = pl.CostEstimate(flops=int(flops), transcendentals=int(B_pad * M * H),
                           bytes_accessed=int(bytes_accessed))

    def build(single_buffer_consts):
        def const_spec(shape):
            if single_buffer_consts:
                # Constant index_map -> never changes; one buffer is enough.
                return pl.BlockSpec(shape, lambda i: (0, 0),
                                    pipeline_mode=pl.Buffered(1))
            return pl.BlockSpec(shape, lambda i: (0, 0))

        return pl.pallas_call(
            _make_kernel(Bt, M, C, H, matmul_dtype),
            out_shape=jax.ShapeDtypeStruct((B_pad, C), jnp.float32),
            grid_spec=pltpu.PrefetchScalarGridSpec(
                num_scalar_prefetch=0,
                grid=grid,
                in_specs=[
                    pl.BlockSpec((Bt, M, C), lambda i: (i, 0, 0)),   # x
                    const_spec((C, C)),                              # Wq^T
                    const_spec((1, C)),                              # bq
                    const_spec((C, C)),                              # Wk^T
                    const_spec((1, C)),                              # bk
                    const_spec((C, H)),                              # selector (scaled)
                    const_spec((H, C)),                              # selector^T
                ],
                out_specs=pl.BlockSpec((Bt, C), lambda i: (i, 0)),
            ),
            compiler_params=pltpu.CompilerParams(
                dimension_semantics=("parallel",),
                vmem_limit_bytes=vmem_limit),
            cost_estimate=cost,
        )

    args = (x, wq_c, bq2, wk_c, bk2, ehs, ehb)
    try:
        out = build(True)(*args)
    except Exception:
        # pipeline_mode=pl.Buffered(1) not supported on this jax version /
        # backend (e.g. some interpret paths): fall back to default buffering.
        out = build(False)(*args)

    return out[:B]


def mhsa_reference(x, wq_t, bq, wk_t, bk, head_num):
    """Pure-JAX transcription of the PyTorch forward for verification."""
    B, M, C = x.shape
    H = head_num
    D = C // H
    q = jnp.mean(x, axis=1) @ wq_t + bq                    # (B, C)
    k = x @ wk_t + bk                                      # (B, M, C)
    q = q.reshape(B, 1, H, D).transpose(0, 2, 1, 3)        # (B, H, 1, D)
    k = k.reshape(B, M, H, D).transpose(0, 2, 3, 1)        # (B, H, D, M)
    v = x.reshape(B, M, H, D).transpose(0, 2, 1, 3)        # (B, H, M, D)
    alpha = jax.nn.softmax(q @ k / math.sqrt(D), axis=-1)  # (B, H, 1, M)
    o = alpha @ v                                          # (B, H, 1, D)
    return o.transpose(0, 2, 1, 3).reshape(B, H * D)


def xavier_uniform(key, out_features, in_features):
    # matches torch.nn.init.xavier_uniform_ on a (out, in) weight
    limit = math.sqrt(6.0 / (in_features + out_features))
    return jax.random.uniform(
        key, (out_features, in_features), jnp.float32, minval=-limit, maxval=limit
    )


if __name__ == "__main__":
    # module config: in_channels == out_channels == H*D (required by forward's view of x)
    head_num = 4
    in_channels = out_channels = 32

    key = jax.random.PRNGKey(0)
    kq, kk, kv, kx = jax.random.split(key, 4)

    # deterministic parameter init (PyTorch weight layout is (out, in); transpose for x @ W)
    wq = xavier_uniform(kq, out_channels, in_channels)
    wk = xavier_uniform(kk, out_channels, in_channels)
    _wv = xavier_uniform(kv, out_channels, in_channels)  # v_lin exists in __init__, unused in forward
    bq = jnp.zeros((out_channels,), jnp.float32)
    bk = jnp.zeros((out_channels,), jnp.float32)

    # (B, M, matmul_dtype, tolerance)
    #  1) f32 MXU path, exact softmax divide -> tight check of the semantics
    #  2) default bf16 MXU-operand path (perf) -> looser tolerance
    #  3) batch not a multiple of 8 (padding path) + grid of 2 blocks
    configs = [
        (2, 8, jnp.float32, 5e-3),
        (2, 8, jnp.bfloat16, 5e-2),
        (12, 16, jnp.bfloat16, 5e-2),
    ]
    for idx, (B, M, mdt, tol) in enumerate(configs):
        x = jax.random.normal(jax.random.fold_in(kx, idx), (B, M, in_channels),
                              jnp.float32)
        out = mhsa_pallas(x, wq.T, bq, wk.T, bk, head_num, matmul_dtype=mdt)
        out = jax.block_until_ready(out)
        ref = mhsa_reference(x, wq.T, bq, wk.T, bk, head_num)
        np.testing.assert_allclose(np.asarray(out), np.asarray(ref),
                                   rtol=tol, atol=tol)

    print("KERNEL_OK")
</pallas_src>

<mosaic_0001>
module attributes {stable_mosaic.version = 11 : i64} {
  func.func @kernel(%arg0: i32, %arg1: memref<8x8x32xf32, #tpu.memory_space<vmem>>, %arg2: memref<32x32xf32, #tpu.memory_space<vmem>>, %arg3: memref<1x32xf32, #tpu.memory_space<vmem>>, %arg4: memref<32x32xf32, #tpu.memory_space<vmem>>, %arg5: memref<1x32xf32, #tpu.memory_space<vmem>>, %arg6: memref<32x4xf32, #tpu.memory_space<vmem>>, %arg7: memref<4x32xf32, #tpu.memory_space<vmem>>, %arg8: memref<8x32xf32, #tpu.memory_space<vmem>>) attributes {dimension_semantics = [#tpu.dimension_semantics<parallel>], iteration_bounds = array<i64: 1>, scalar_prefetch = 0 : i64, scratch_operands = 0 : i64, tpu.core_type = #tpu.core_type<tc>, window_params = [{transform_indices = @transform_0, window_bounds = array<i64: 8, 8, 32>}, {pipeline_mode = #tpu.pipeline_mode<synchronous>, transform_indices = @transform_1, window_bounds = array<i64: 32, 32>}, {pipeline_mode = #tpu.pipeline_mode<synchronous>, transform_indices = @transform_2, window_bounds = array<i64: 1, 32>}, {pipeline_mode = #tpu.pipeline_mode<synchronous>, transform_indices = @transform_3, window_bounds = array<i64: 32, 32>}, {pipeline_mode = #tpu.pipeline_mode<synchronous>, transform_indices = @transform_4, window_bounds = array<i64: 1, 32>}, {pipeline_mode = #tpu.pipeline_mode<synchronous>, transform_indices = @transform_5, window_bounds = array<i64: 32, 4>}, {pipeline_mode = #tpu.pipeline_mode<synchronous>, transform_indices = @transform_6, window_bounds = array<i64: 4, 32>}, {transform_indices = @transform_7, window_bounds = array<i64: 8, 32>}]} {
    %c0 = arith.constant 0 : index
    %c0_0 = arith.constant 0 : index
    %c0_1 = arith.constant 0 : index
    %0 = vector.load %arg1[%c0, %c0_0, %c0_1] : memref<8x8x32xf32, #tpu.memory_space<vmem>>, vector<8x8x32xf32>
    %cst = arith.constant dense<0.000000e+00> : vector<8x32xf32>
    %1 = vector.multi_reduction <add>, %0, %cst [1] : vector<8x8x32xf32> to vector<8x32xf32>
    %cst_2 = arith.constant 8.000000e+00 : f32
    %2 = vector.broadcast %cst_2 : f32 to vector<8x32xf32>
    %3 = arith.divf %1, %2 : vector<8x32xf32>
    %c0_3 = arith.constant 0 : index
    %c0_4 = arith.constant 0 : index
    %4 = vector.load %arg2[%c0_3, %c0_4] : memref<32x32xf32, #tpu.memory_space<vmem>>, vector<32x32xf32>
    %cst_5 = arith.constant dense<0.000000e+00> : vector<8x32xf32>
    %5 = tpu.matmul %3, %4, %cst_5 {dimension_numbers = #tpu.dot_dimension_numbers<[1], [0], [0], [1], [0, 0, 1, 1], [], []>} : vector<8x32xf32>, vector<32x32xf32>, vector<8x32xf32> -> vector<8x32xf32>
    %c0_6 = arith.constant 0 : index
    %c0_7 = arith.constant 0 : index
    %6 = vector.load %arg3[%c0_6, %c0_7] : memref<1x32xf32, #tpu.memory_space<vmem>>, vector<1x32xf32>
    %7 = vector.broadcast %6 : vector<1x32xf32> to vector<8x32xf32>
    %8 = arith.addf %5, %7 : vector<8x32xf32>
    %9 = vector.shape_cast %0 : vector<8x8x32xf32> to vector<64x32xf32>
    %c0_8 = arith.constant 0 : index
    %c0_9 = arith.constant 0 : index
    %10 = vector.load %arg4[%c0_8, %c0_9] : memref<32x32xf32, #tpu.memory_space<vmem>>, vector<32x32xf32>
    %cst_10 = arith.constant dense<0.000000e+00> : vector<64x32xf32>
    %11 = tpu.matmul %9, %10, %cst_10 {dimension_numbers = #tpu.dot_dimension_numbers<[1], [0], [0], [1], [0, 0, 1, 1], [], []>} : vector<64x32xf32>, vector<32x32xf32>, vector<64x32xf32> -> vector<64x32xf32>
    %c0_11 = arith.constant 0 : index
    %c0_12 = arith.constant 0 : index
    %12 = vector.load %arg5[%c0_11, %c0_12] : memref<1x32xf32, #tpu.memory_space<vmem>>, vector<1x32xf32>
    %13 = vector.broadcast %12 : vector<1x32xf32> to vector<64x32xf32>
    %14 = arith.addf %11, %13 : vector<64x32xf32>
    %15 = vector.shape_cast %14 : vector<64x32xf32> to vector<8x8x32xf32>
    %16 = vector.shape_cast %8 : vector<8x32xf32> to vector<8x1x32xf32>
    %17 = vector.broadcast %16 : vector<8x1x32xf32> to vector<8x8x32xf32>
    %18 = arith.mulf %15, %17 : vector<8x8x32xf32>
    %19 = vector.shape_cast %18 : vector<8x8x32xf32> to vector<64x32xf32>
    %c0_13 = arith.constant 0 : index
    %c0_14 = arith.constant 0 : index
    %20 = vector.load %arg6[%c0_13, %c0_14] : memref<32x4xf32, #tpu.memory_space<vmem>>, vector<32x4xf32>
    %cst_15 = arith.constant dense<0.000000e+00> : vector<64x4xf32>
    %21 = tpu.matmul %19, %20, %cst_15 {dimension_numbers = #tpu.dot_dimension_numbers<[1], [0], [0], [1], [0, 0, 1, 1], [], []>} : vector<64x32xf32>, vector<32x4xf32>, vector<64x4xf32> -> vector<64x4xf32>
    %22 = vector.shape_cast %21 : vector<64x4xf32> to vector<8x8x4xf32>
    %cst_16 = arith.constant dense<0xFF800000> : vector<8x4xf32>
    %23 = vector.multi_reduction <maximumf>, %22, %cst_16 [1] : vector<8x8x4xf32> to vector<8x4xf32>
    %24 = vector.shape_cast %23 : vector<8x4xf32> to vector<8x1x4xf32>
    %25 = vector.broadcast %24 : vector<8x1x4xf32> to vector<8x8x4xf32>
    %26 = arith.subf %22, %25 : vector<8x8x4xf32>
    %27 = math.exp %26 : vector<8x8x4xf32>
    %cst_17 = arith.constant dense<0.000000e+00> : vector<8x4xf32>
    %28 = vector.multi_reduction <add>, %27, %cst_17 [1] : vector<8x8x4xf32> to vector<8x4xf32>
    %29 = vector.shape_cast %28 : vector<8x4xf32> to vector<8x1x4xf32>
    %30 = vector.broadcast %29 : vector<8x1x4xf32> to vector<8x8x4xf32>
    %31 = arith.divf %27, %30 : vector<8x8x4xf32>
    %32 = vector.shape_cast %31 : vector<8x8x4xf32> to vector<64x4xf32>
    %c0_18 = arith.constant 0 : index
    %c0_19 = arith.constant 0 : index
    %33 = vector.load %arg7[%c0_18, %c0_19] : memref<4x32xf32, #tpu.memory_space<vmem>>, vector<4x32xf32>
    %cst_20 = arith.constant dense<0.000000e+00> : vector<64x32xf32>
    %34 = tpu.matmul %32, %33, %cst_20 {dimension_numbers = #tpu.dot_dimension_numbers<[1], [0], [0], [1], [0, 0, 1, 1], [], []>} : vector<64x4xf32>, vector<4x32xf32>, vector<64x32xf32> -> vector<64x32xf32>
    %35 = vector.shape_cast %34 : vector<64x32xf32> to vector<8x8x32xf32>
    %36 = arith.mulf %35, %0 : vector<8x8x32xf32>
    %cst_21 = arith.constant dense<0.000000e+00> : vector<8x32xf32>
    %37 = vector.multi_reduction <add>, %36, %cst_21 [1] : vector<8x8x32xf32> to vector<8x32xf32>
    %c0_22 = arith.constant 0 : index
    %c0_23 = arith.constant 0 : index
    %38 = vector.load %arg8[%c0_22, %c0_23] : memref<8x32xf32, #tpu.memory_space<vmem>>, vector<8x32xf32>
    tpu.vector_store %arg8[%c0_22, %c0_23], %37 {strides = array<i32>} : memref<8x32xf32, #tpu.memory_space<vmem>>, vector<8x32xf32>,
    return
  }
  func.func @transform_0(%arg0: i32) -> (i32, i32, i32) {
    %c0_i32 = arith.constant 0 : i32
    %c0_i32_0 = arith.constant 0 : i32
    %c0_i32_1 = arith.constant 0 : i32
    return %arg0, %c0_i32, %c0_i32_0 : i32, i32, i32
  }
  func.func @transform_1(%arg0: i32) -> (i32, i32) {
    %c0_i32 = arith.constant 0 : i32
    %c0_i32_0 = arith.constant 0 : i32
    %c0_i32_1 = arith.constant 0 : i32
    return %c0_i32, %c0_i32_0 : i32, i32
  }
  func.func @transform_2(%arg0: i32) -> (i32, i32) {
    %c0_i32 = arith.constant 0 : i32
    %c0_i32_0 = arith.constant 0 : i32
    %c0_i32_1 = arith.constant 0 : i32
    return %c0_i32, %c0_i32_0 : i32, i32
  }
  func.func @transform_3(%arg0: i32) -> (i32, i32) {
    %c0_i32 = arith.constant 0 : i32
    %c0_i32_0 = arith.constant 0 : i32
    %c0_i32_1 = arith.constant 0 : i32
    return %c0_i32, %c0_i32_0 : i32, i32
  }
  func.func @transform_4(%arg0: i32) -> (i32, i32) {
    %c0_i32 = arith.constant 0 : i32
    %c0_i32_0 = arith.constant 0 : i32
    %c0_i32_1 = arith.constant 0 : i32
    return %c0_i32, %c0_i32_0 : i32, i32
  }
  func.func @transform_5(%arg0: i32) -> (i32, i32) {
    %c0_i32 = arith.constant 0 : i32
    %c0_i32_0 = arith.constant 0 : i32
    %c0_i32_1 = arith.constant 0 : i32
    return %c0_i32, %c0_i32_0 : i32, i32
  }
  func.func @transform_6(%arg0: i32) -> (i32, i32) {
    %c0_i32 = arith.constant 0 : i32
    %c0_i32_0 = arith.constant 0 : i32
    %c0_i32_1 = arith.constant 0 : i32
    return %c0_i32, %c0_i32_0 : i32, i32
  }
  func.func @transform_7(%arg0: i32) -> (i32, i32) {
    %c0_i32 = arith.constant 0 : i32
    %c0_i32_0 = arith.constant 0 : i32
    return %arg0, %c0_i32 : i32, i32
  }
}

module attributes {stable_mosaic.version = 11 : i64} {
  func.func @kernel(%arg0: i32, %arg1: memref<8x8x32xf32, #tpu.memory_space<vmem>>, %arg2: memref<32x32xf32, #tpu.memory_space<vmem>>, %arg3: memref<1x32xf32, #tpu.memory_space<vmem>>, %arg4: memref<32x32xf32, #tpu.memory_space<vmem>>, %arg5: memref<1x32xf32, #tpu.memory_space<vmem>>, %arg6: memref<32x4xf32, #tpu.memory_space<vmem>>, %arg7: memref<4x32xf32, #tpu.memory_space<vmem>>, %arg8: memref<8x32xf32, #tpu.memory_space<vmem>>) attributes {dimension_semantics = [#tpu.dimension_semantics<parallel>], iteration_bounds = array<i64: 1>, scalar_prefetch = 0 : i64, scratch_operands = 0 : i64, tpu.core_type = #tpu.core_type<tc>, window_params = [{transform_indices = @transform_0, window_bounds = array<i64: 8, 8, 32>}, {pipeline_mode = #tpu.pipeline_mode<synchronous>, transform_indices = @transform_1, window_bounds = array<i64: 32, 32>}, {pipeline_mode = #tpu.pipeline_mode<synchronous>, transform_indices = @transform_2, window_bounds = array<i64: 1, 32>}, {pipeline_mode = #tpu.pipeline_mode<synchronous>, transform_indices = @transform_3, window_bounds = array<i64: 32, 32>}, {pipeline_mode = #tpu.pipeline_mode<synchronous>, transform_indices = @transform_4, window_bounds = array<i64: 1, 32>}, {pipeline_mode = #tpu.pipeline_mode<synchronous>, transform_indices = @transform_5, window_bounds = array<i64: 32, 4>}, {pipeline_mode = #tpu.pipeline_mode<synchronous>, transform_indices = @transform_6, window_bounds = array<i64: 4, 32>}, {transform_indices = @transform_7, window_bounds = array<i64: 8, 32>}]} {
    %c0 = arith.constant 0 : index
    %c0_0 = arith.constant 0 : index
    %c0_1 = arith.constant 0 : index
    %0 = vector.load %arg1[%c0, %c0_0, %c0_1] : memref<8x8x32xf32, #tpu.memory_space<vmem>>, vector<8x8x32xf32>
    %cst = arith.constant dense<0.000000e+00> : vector<8x32xf32>
    %1 = vector.multi_reduction <add>, %0, %cst [1] : vector<8x8x32xf32> to vector<8x32xf32>
    %cst_2 = arith.constant 8.000000e+00 : f32
    %2 = vector.broadcast %cst_2 : f32 to vector<8x32xf32>
    %3 = arith.divf %1, %2 : vector<8x32xf32>
    %c0_3 = arith.constant 0 : index
    %c0_4 = arith.constant 0 : index
    %4 = vector.load %arg2[%c0_3, %c0_4] : memref<32x32xf32, #tpu.memory_space<vmem>>, vector<32x32xf32>
    %cst_5 = arith.constant dense<0.000000e+00> : vector<8x32xf32>
    %5 = tpu.matmul %3, %4, %cst_5 {dimension_numbers = #tpu.dot_dimension_numbers<[1], [0], [0], [1], [0, 0, 1, 1], [], []>} : vector<8x32xf32>, vector<32x32xf32>, vector<8x32xf32> -> vector<8x32xf32>
    %c0_6 = arith.constant 0 : index
    %c0_7 = arith.constant 0 : index
    %6 = vector.load %arg3[%c0_6, %c0_7] : memref<1x32xf32, #tpu.memory_space<vmem>>, vector<1x32xf32>
    %7 = vector.broadcast %6 : vector<1x32xf32> to vector<8x32xf32>
    %8 = arith.addf %5, %7 : vector<8x32xf32>
    %9 = vector.shape_cast %0 : vector<8x8x32xf32> to vector<64x32xf32>
    %c0_8 = arith.constant 0 : index
    %c0_9 = arith.constant 0 : index
    %10 = vector.load %arg4[%c0_8, %c0_9] : memref<32x32xf32, #tpu.memory_space<vmem>>, vector<32x32xf32>
    %cst_10 = arith.constant dense<0.000000e+00> : vector<64x32xf32>
    %11 = tpu.matmul %9, %10, %cst_10 {dimension_numbers = #tpu.dot_dimension_numbers<[1], [0], [0], [1], [0, 0, 1, 1], [], []>} : vector<64x32xf32>, vector<32x32xf32>, vector<64x32xf32> -> vector<64x32xf32>
    %c0_11 = arith.constant 0 : index
    %c0_12 = arith.constant 0 : index
    %12 = vector.load %arg5[%c0_11, %c0_12] : memref<1x32xf32, #tpu.memory_space<vmem>>, vector<1x32xf32>
    %13 = vector.broadcast %12 : vector<1x32xf32> to vector<64x32xf32>
    %14 = arith.addf %11, %13 : vector<64x32xf32>
    %15 = vector.shape_cast %14 : vector<64x32xf32> to vector<8x8x32xf32>
    %16 = vector.shape_cast %8 : vector<8x32xf32> to vector<8x1x32xf32>
    %17 = vector.broadcast %16 : vector<8x1x32xf32> to vector<8x8x32xf32>
    %18 = arith.mulf %15, %17 : vector<8x8x32xf32>
    %19 = vector.shape_cast %18 : vector<8x8x32xf32> to vector<64x32xf32>
    %c0_13 = arith.constant 0 : index
    %c0_14 = arith.constant 0 : index
    %20 = vector.load %arg6[%c0_13, %c0_14] : memref<32x4xf32, #tpu.memory_space<vmem>>, vector<32x4xf32>
    %cst_15 = arith.constant dense<0.000000e+00> : vector<64x4xf32>
    %21 = tpu.matmul %19, %20, %cst_15 {dimension_numbers = #tpu.dot_dimension_numbers<[1], [0], [0], [1], [0, 0, 1, 1], [], []>} : vector<64x32xf32>, vector<32x4xf32>, vector<64x4xf32> -> vector<64x4xf32>
    %22 = vector.shape_cast %21 : vector<64x4xf32> to vector<8x8x4xf32>
    %cst_16 = arith.constant dense<0xFF800000> : vector<8x4xf32>
    %23 = vector.multi_reduction <maximumf>, %22, %cst_16 [1] : vector<8x8x4xf32> to vector<8x4xf32>
    %24 = vector.shape_cast %23 : vector<8x4xf32> to vector<8x1x4xf32>
    %25 = vector.broadcast %24 : vector<8x1x4xf32> to vector<8x8x4xf32>
    %26 = arith.subf %22, %25 : vector<8x8x4xf32>
    %27 = math.exp %26 : vector<8x8x4xf32>
    %cst_17 = arith.constant dense<0.000000e+00> : vector<8x4xf32>
    %28 = vector.multi_reduction <add>, %27, %cst_17 [1] : vector<8x8x4xf32> to vector<8x4xf32>
    %29 = vector.shape_cast %28 : vector<8x4xf32> to vector<8x1x4xf32>
    %30 = vector.broadcast %29 : vector<8x1x4xf32> to vector<8x8x4xf32>
    %31 = arith.divf %27, %30 : vector<8x8x4xf32>
    %32 = vector.shape_cast %31 : vector<8x8x4xf32> to vector<64x4xf32>
    %c0_18 = arith.constant 0 : index
    %c0_19 = arith.constant 0 : index
    %33 = vector.load %arg7[%c0_18, %c0_19] : memref<4x32xf32, #tpu.memory_space<vmem>>, vector<4x32xf32>
    %cst_20 = arith.constant dense<0.000000e+00> : vector<64x32xf32>
    %34 = tpu.matmul %32, %33, %cst_20 {dimension_numbers = #tpu.dot_dimension_numbers<[1], [0], [0], [1], [0, 0, 1, 1], [], []>} : vector<64x4xf32>, vector<4x32xf32>, vector<64x32xf32> -> vector<64x32xf32>
    %35 = vector.shape_cast %34 : vector<64x32xf32> to vector<8x8x32xf32>
    %36 = arith.mulf %35, %0 : vector<8x8x32xf32>
    %cst_21 = arith.constant dense<0.000000e+00> : vector<8x32xf32>
    %37 = vector.multi_reduction <add>, %36, %cst_21 [1] : vector<8x8x32xf32> to vector<8x32xf32>
    %c0_22 = arith.constant 0 : index
    %c0_23 = arith.constant 0 : index
    %38 = vector.load %arg8[%c0_22, %c0_23] : memref<8x32xf32, #tpu.memory_space<vmem>>, vector<8x32xf32>
    tpu.vector_store %arg8[%c0_22, %c0_23], %37 {strides = array<i32>} : memref<8x32xf32, #tpu.memory_space<vmem>>, vector<8x32xf32>,
    return
  }
  func.func @transform_0(%arg0: i32) -> (i32, i32, i32) {
    %c0_i32 = arith.constant 0 : i32
    %c0_i32_0 = arith.constant 0 : i32
    %c0_i32_1 = arith.constant 0 : i32
    return %arg0, %c0_i32, %c0_i32_0 : i32, i32, i32
  }
  func.func @transform_1(%arg0: i32) -> (i32, i32) {
    %c0_i32 = arith.constant 0 : i32
    %c0_i32_0 = arith.constant 0 : i32
    %c0_i32_1 = arith.constant 0 : i32
    return %c0_i32, %c0_i32_0 : i32, i32
  }
  func.func @transform_2(%arg0: i32) -> (i32, i32) {
    %c0_i32 = arith.constant 0 : i32
    %c0_i32_0 = arith.constant 0 : i32
    %c0_i32_1 = arith.constant 0 : i32
    return %c0_i32, %c0_i32_0 : i32, i32
  }
  func.func @transform_3(%arg0: i32) -> (i32, i32) {
    %c0_i32 = arith.constant 0 : i32
    %c0_i32_0 = arith.constant 0 : i32
    %c0_i32_1 = arith.constant 0 : i32
    return %c0_i32, %c0_i32_0 : i32, i32
  }
  func.func @transform_4(%arg0: i32) -> (i32, i32) {
    %c0_i32 = arith.constant 0 : i32
    %c0_i32_0 = arith.constant 0 : i32
    %c0_i32_1 = arith.constant 0 : i32
    return %c0_i32, %c0_i32_0 : i32, i32
  }
  func.func @transform_5(%arg0: i32) -> (i32, i32) {
    %c0_i32 = arith.constant 0 : i32
    %c0_i32_0 = arith.constant 0 : i32
    %c0_i32_1 = arith.constant 0 : i32
    return %c0_i32, %c0_i32_0 : i32, i32
  }
  func.func @transform_6(%arg0: i32) -> (i32, i32) {
    %c0_i32 = arith.constant 0 : i32
    %c0_i32_0 = arith.constant 0 : i32
    %c0_i32_1 = arith.constant 0 : i32
    return %c0_i32, %c0_i32_0 : i32, i32
  }
  func.func @transform_7(%arg0: i32) -> (i32, i32) {
    %c0_i32 = arith.constant 0 : i32
    %c0_i32_0 = arith.constant 0 : i32
    return %arg0, %c0_i32 : i32, i32
  }
}

</mosaic_0001>

<llo_original>
// kernel: tpu_custom_call.1
$region0: #{tpu_custom_call.1}
  #allocation0 [shape = 'u32[]', space=smem, size = 0x4, offset = 0x4, fixed_abs, tag = 'smem constant byte address 0x4 - core index']
  #allocation1 [shape = 'u32[144,128]{1,0:T(1,128)}', space=vmem, size = 0x12000, scoped, tag = 'internal scratch']
  %s0 = inlined_call_operand.hbm [shape: f32[8,8,32], index: 0, kind: input, shape index: {}]
  %s1 = inlined_call_operand.vmem [shape: f32[32,32], index: 1, kind: input, shape index: {}]
  %s2 = inlined_call_operand.vmem [shape: f32[1,32], index: 2, kind: input, shape index: {}]
  %s3 = inlined_call_operand.hbm [shape: f32[32,32], index: 3, kind: input, shape index: {}]
  %s4 = inlined_call_operand.vmem [shape: f32[1,32], index: 4, kind: input, shape index: {}]
  %s5 = inlined_call_operand.vmem [shape: f32[32,4], index: 5, kind: input, shape index: {}]
  %s6 = inlined_call_operand.vmem [shape: f32[4,32], index: 6, kind: input, shape index: {}]
  %s7 = inlined_call_operand.hbm [shape: f32[8,32], index: 7, kind: output, shape index: {}]
  %s8 = sld [smem:[#allocation0]]
  $region46: #{tpu_custom_call.1} parent=0
    _
  %s10 = ssub.s32 1, %s8
  %s11 = scalar_select 0, %s10, %s8
  $region1: #{tpu_custom_call.1} parent=0
    #allocation2 [shape = 'u8[32768]{0}', space=vmem, size = 0x8000, scoped, tag = 'input window, operand 0, single buffered']
    #allocation3 [shape = 's32[1]{0}', space=sflag, size = 0x4, scoped, tag = 'scoped memory for tpu_custom_call.1']
    #allocation4 [shape = 's32[1]{0}', space=sflag, size = 0x4, scoped, tag = 'scoped memory for tpu_custom_call.1']
    #allocation5 [shape = 'u8[16384]{0}', space=vmem, size = 0x4000, scoped, tag = 'input window, operand 3, single buffered']
    #allocation6 [shape = 's32[1]{0}', space=sflag, size = 0x4, scoped, tag = 'scoped memory for tpu_custom_call.1']
    #allocation7 [shape = 'u8[4096]{0}', space=vmem, size = 0x1000, scoped, tag = 'output window, operand 0, single buffered']
    %12 = vsyncpa [#allocation3], 0
    %13 = vsyncpa [#allocation6], 0
    %14 = vsyncpa [#allocation4], 0
    // Predicated region
    $region2: #{tpu_custom_call.1} parent=1 // pred_check
      _
    $region3: #{tpu_custom_call.1} parent=1 // pred_check_branch
      %16 = sbr.rel (0) target = $region5
    $region4: #{tpu_custom_call.1} parent=1 // pred_region
      %s18 = ssub.s32 1024, 1024
      %19 = vsyncadd [#allocation3], %s18
      %s20 = sshll.u32 [#allocation2], 4
      %s21 = int_to_ptr.vmem [resolvable:$true] %s20
      %26 = dma.hbm_to_vmem [thread:$0]  %s0, 1024, %s21, [#allocation3], 128, 128, 8
    $region5: #{tpu_custom_call.1} parent=1 // pred_fallthru
      _
    // Predicated region
    $region6: #{tpu_custom_call.1} parent=1 // pred_check
      _
    $region7: #{tpu_custom_call.1} parent=1 // pred_check_branch
      %28 = sbr.rel (0) target = $region9
    $region8: #{tpu_custom_call.1} parent=1 // pred_region
      _
    $region9: #{tpu_custom_call.1} parent=1 // pred_fallthru
      _
    // Predicated region
    $region10: #{tpu_custom_call.1} parent=1 // pred_check
      _
    $region11: #{tpu_custom_call.1} parent=1 // pred_check_branch
      %30 = sbr.rel (0) target = $region13
    $region12: #{tpu_custom_call.1} parent=1 // pred_region
      _
    $region13: #{tpu_custom_call.1} parent=1 // pred_fallthru
      _
    // Predicated region
    $region14: #{tpu_custom_call.1} parent=1 // pred_check
      _
    $region15: #{tpu_custom_call.1} parent=1 // pred_check_branch
      %32 = sbr.rel (0) target = $region17
    $region16: #{tpu_custom_call.1} parent=1 // pred_region
      %s34 = ssub.s32 512, 512
      %35 = vsyncadd [#allocation6], %s34
      %s36 = sshll.u32 [#allocation5], 4
      %s37 = int_to_ptr.vmem [resolvable:$true] %s36
      %42 = dma.hbm_to_vmem [thread:$0]  %s3, 512, %s37, [#allocation6], 128, 128, 8
    $region17: #{tpu_custom_call.1} parent=1 // pred_fallthru
      _
    // Predicated region
    $region18: #{tpu_custom_call.1} parent=1 // pred_check
      _
    $region19: #{tpu_custom_call.1} parent=1 // pred_check_branch
      %44 = sbr.rel (0) target = $region21
    $region20: #{tpu_custom_call.1} parent=1 // pred_region
      _
    $region21: #{tpu_custom_call.1} parent=1 // pred_fallthru
      _
    // Predicated region
    $region22: #{tpu_custom_call.1} parent=1 // pred_check
      _
    $region23: #{tpu_custom_call.1} parent=1 // pred_check_branch
      %46 = sbr.rel (0) target = $region25
    $region24: #{tpu_custom_call.1} parent=1 // pred_region
      _
    $region25: #{tpu_custom_call.1} parent=1 // pred_fallthru
      _
    // Predicated region
    $region26: #{tpu_custom_call.1} parent=1 // pred_check
      _
    $region27: #{tpu_custom_call.1} parent=1 // pred_check_branch
      %48 = sbr.rel (0) target = $region29
    $region28: #{tpu_custom_call.1} parent=1 // pred_region
      _
    $region29: #{tpu_custom_call.1} parent=1 // pred_fallthru
      _
    // Predicated region
    $region30: #{tpu_custom_call.1} parent=1 // pred_check
      _
    $region31: #{tpu_custom_call.1} parent=1 // pred_check_branch
      %50 = sbr.rel (0) target = $region33
    $region32: #{tpu_custom_call.1} parent=1 // pred_region
      %51 = dma.done [#allocation3], 1024
    $region33: #{tpu_custom_call.1} parent=1 // pred_fallthru
      _
    // Predicated region
    $region34: #{tpu_custom_call.1} parent=1 // pred_check
      _
    $region35: #{tpu_custom_call.1} parent=1 // pred_check_branch
      %53 = sbr.rel (0) target = $region37
    $region36: #{tpu_custom_call.1} parent=1 // pred_region
      %54 = dma.done [#allocation6], 512
    $region37: #{tpu_custom_call.1} parent=1 // pred_fallthru
      _
    %v55 = vld [vmem:[#allocation2] sm:$0xff]
    %v56 = vld [vmem:[#allocation2 + $0x8] sm:$0xff]
    %v57 = vld [vmem:[#allocation2 + $0x10] sm:$0xff]
    %v58 = vld [vmem:[#allocation2 + $0x18] sm:$0xff]
    %v59 = vld [vmem:[#allocation2 + $0x20] sm:$0xff]
    %v60 = vld [vmem:[#allocation2 + $0x28] sm:$0xff]
    %v61 = vld [vmem:[#allocation2 + $0x30] sm:$0xff]
    %v62 = vld [vmem:[#allocation2 + $0x38] sm:$0xff]
    %vm63 = vcmask 261120
    %v64 = vsel %vm63, %v55, 0.0
    %v65 = vrot.slane %v64, 4
    %v66 = vadd.f32 %v64, %v65
    %v67 = vrot.slane %v66, 2
    %v68 = vadd.f32 %v66, %v67
    %v69 = vrot.slane %v68, 1
    %v70 = vadd.f32 %v68, %v69
    %v71 = vsel %vm63, %v56, 0.0
    %v72 = vrot.slane %v71, 4
    %v73 = vadd.f32 %v71, %v72
    %v74 = vrot.slane %v73, 2
    %v75 = vadd.f32 %v73, %v74
    %v76 = vrot.slane %v75, 1
    %v77 = vadd.f32 %v75, %v76
    %v78 = vsel %vm63, %v57, 0.0
    %v79 = vrot.slane %v78, 4
    %v80 = vadd.f32 %v78, %v79
    %v81 = vrot.slane %v80, 2
    %v82 = vadd.f32 %v80, %v81
    %v83 = vrot.slane %v82, 1
    %v84 = vadd.f32 %v82, %v83
    %v85 = vsel %vm63, %v58, 0.0
    %v86 = vrot.slane %v85, 4
    %v87 = vadd.f32 %v85, %v86
    %v88 = vrot.slane %v87, 2
    %v89 = vadd.f32 %v87, %v88
    %v90 = vrot.slane %v89, 1
    %v91 = vadd.f32 %v89, %v90
    %v92 = vsel %vm63, %v59, 0.0
    %v93 = vrot.slane %v92, 4
    %v94 = vadd.f32 %v92, %v93
    %v95 = vrot.slane %v94, 2
    %v96 = vadd.f32 %v94, %v95
    %v97 = vrot.slane %v96, 1
    %v98 = vadd.f32 %v96, %v97
    %v99 = vsel %vm63, %v60, 0.0
    %v100 = vrot.slane %v99, 4
    %v101 = vadd.f32 %v99, %v100
    %v102 = vrot.slane %v101, 2
    %v103 = vadd.f32 %v101, %v102
    %v104 = vrot.slane %v103, 1
    %v105 = vadd.f32 %v103, %v104
    %v106 = vsel %vm63, %v61, 0.0
    %v107 = vrot.slane %v106, 4
    %v108 = vadd.f32 %v106, %v107
    %v109 = vrot.slane %v108, 2
    %v110 = vadd.f32 %v108, %v109
    %v111 = vrot.slane %v110, 1
    %v112 = vadd.f32 %v110, %v111
    %v113 = vsel %vm63, %v62, 0.0
    %v114 = vrot.slane %v113, 4
    %v115 = vadd.f32 %v113, %v114
    %v116 = vrot.slane %v115, 2
    %v117 = vadd.f32 %v115, %v116
    %v118 = vrot.slane %v117, 1
    %v119 = vadd.f32 %v117, %v118
    %v120 = vrcp.pop 8.0
    %v121 = vmul.f32 %v70, %v120
    %v122 = vmul.f32 %v77, %v120
    %v123 = vmul.f32 %v84, %v120
    %v124 = vmul.f32 %v91, %v120
    %v125 = vmul.f32 %v98, %v120
    %v126 = vmul.f32 %v105, %v120
    %v127 = vmul.f32 %v112, %v120
    %v128 = vmul.f32 %v119, %v120
    %v129 = vld [vmem:[%s1] sm:$0xff]
    %v130 = vld [vmem:[%s1 + $0x8] sm:$0xff]
    %v131 = vld [vmem:[%s1 + $0x10] sm:$0xff]
    %v132 = vld [vmem:[%s1 + $0x18] sm:$0xff]
    %v133 = vld [vmem:[%s2] sm:$0x1]
    %v135 = vlaneseq
    %v136 = vshrl.u32 %v135, 7
    %v137 = vsub.s32 0, %v136
    %v138 = vrot.slane %v133, %v137
    %vm148 = vcmask 1041409
    %v149 = vsel %vm148, %v122, %v121
    %vm150 = vcmask 1042434
    %v151 = vsel %vm150, %v123, %v149
    %vm152 = vcmask 1043459
    %v153 = vsel %vm152, %v124, %v151
    %vm154 = vcmask 1044484
    %v155 = vsel %vm154, %v125, %v153
    %vm156 = vcmask 1045509
    %v157 = vsel %vm156, %v126, %v155
    %vm158 = vcmask 1046534
    %v159 = vsel %vm158, %v127, %v157
    %vm160 = vcmask 1047559
    %v161 = vsel %vm160, %v128, %v159
    %v162 = vsel %vm63, %v161, 0
    %164 = vmatprep.subr.mxu0 0.0
    %165 = vmatpush1.msra.mxu0 %v129
    %166 = vmatprep.subr.mxu0 0.0
    %167 = vmatpush1.msra.mxu0 %v130
    %168 = vmatprep.subr.mxu0 0.0
    %169 = vmatpush1.msra.mxu0 %v131
    %170 = vmatprep.subr.mxu0 0.0
    %171 = vmatpush1.msra.mxu0 %v132
    %172 = vmatprep.subr.mxu0 0.0
    %173 = vmatpush1.msra.mxu0 0.0
    %174 = vmatprep.subr.mxu0 0.0
    %175 = vmatpush1.msra.mxu0 0.0
    %176 = vmatprep.subr.mxu0 0.0
    %177 = vmatpush1.msra.mxu0 0.0
    %178 = vmatprep.subr.mxu0 0.0
    %179 = vmatpush1.msra.mxu0 0.0
    %180 = vmatprep.subr.mxu0 0.0
    %181 = vmatpush1.msra.mxu0 0.0
    %182 = vmatprep.subr.mxu0 0.0
    %183 = vmatpush1.msra.mxu0 0.0
    %184 = vmatprep.subr.mxu0 0.0
    %185 = vmatpush1.msra.mxu0 0.0
    %186 = vmatprep.subr.mxu0 0.0
    %187 = vmatpush1.msra.mxu0 0.0
    %188 = vmatprep.subr.mxu0 0.0
    %189 = vmatpush1.msra.mxu0 0.0
    %190 = vmatprep.subr.mxu0 0.0
    %191 = vmatpush1.msra.mxu0 0.0
    %192 = vmatprep.subr.mxu0 0.0
    %193 = vmatpush1.msra.mxu0 0.0
    %194 = vmatprep.subr.mxu0 0.0
    %195 = vmatpush1.msra.mxu0 0.0
    %196 = vmatprep.subr.mxu0 0.0
    %197 = vmatpush1.msra.mxu0 0.0
    %198 = vmatprep.subr.mxu0 0.0
    %199 = vmatpush1.msra.mxu0 0.0
    %200 = vmatprep.subr.mxu0 0.0
    %201 = vmatpush1.msra.mxu0 0.0
    %202 = vmatprep.subr.mxu0 0.0
    %203 = vmatpush1.msra.mxu0 0.0
    %204 = vmatprep.subr.mxu0 0.0
    %205 = vmatpush1.msra.mxu0 0.0
    %206 = vmatprep.subr.mxu0 0.0
    %207 = vmatpush1.msra.mxu0 0.0
    %208 = vmatprep.subr.mxu0 0.0
    %209 = vmatpush1.msra.mxu0 0.0
    %210 = vmatprep.subr.mxu0 0.0
    %211 = vmatpush1.msra.mxu0 0.0
    %212 = vmatprep.subr.mxu0 0.0
    %213 = vmatpush1.msra.mxu0 0.0
    %214 = vmatprep.subr.mxu0 0.0
    %215 = vmatpush1.msra.mxu0 0.0
    %216 = vmatprep.subr.mxu0 0.0
    %217 = vmatpush1.msra.mxu0 0.0
    %218 = vmatprep.subr.mxu0 0.0
    %219 = vmatpush1.msra.mxu0 0.0
    %220 = vmatprep.subr.mxu0 0.0
    %221 = vmatpush1.msra.mxu0 0.0
    %222 = vmatprep.subr.mxu0 0.0
    %223 = vmatpush1.msra.mxu0 0.0
    %224 = vmatprep.subr.mxu0 0.0
    %225 = vmatpush1.msra.mxu0 0.0
    %226 = vmatprep.subr.mxu0 0.0
    %227 = vmatpush1.msra.mxu0 0.0
    %228 = vmatprep.mubr.f32.mxu0 0.0
    %229 = vmatmul.mubr.f32.gmra.mrb[0].mxu0 %v162
    %v230 = vpop.f32.mrb[0].mxu0
    %v231 = vadd.f32 %v138, %v230
    %v232 = vpop.f32.mrb[0].mxu0
    %233 = vdwg.mxu0
    %v234 = vld [vmem:[#allocation5] sm:$0xff]
    %v235 = vld [vmem:[#allocation5 + $0x8] sm:$0xff]
    %v236 = vld [vmem:[#allocation5 + $0x10] sm:$0xff]
    %v237 = vld [vmem:[#allocation5 + $0x18] sm:$0xff]
    %v238 = vld [vmem:[%s4] sm:$0x1]
    %v240 = vlaneseq
    %v241 = vshrl.u32 %v240, 7
    %v242 = vsub.s32 0, %v241
    %v243 = vrot.slane %v238, %v242
    %v246 = vsel %vm63, %v55, 0
    %v249 = vsel %vm63, %v56, 0
    %v252 = vsel %vm63, %v57, 0
    %v255 = vsel %vm63, %v58, 0
    %v258 = vsel %vm63, %v59, 0
    %v261 = vsel %vm63, %v60, 0
    %v264 = vsel %vm63, %v61, 0
    %v267 = vsel %vm63, %v62, 0
    %269 = vmatprep.subr.mxu0 0.0
    %270 = vmatpush1.msra.mxu0 %v234
    %271 = vmatprep.subr.mxu0 0.0
    %272 = vmatpush1.msra.mxu0 %v235
    %273 = vmatprep.subr.mxu0 0.0
    %274 = vmatpush1.msra.mxu0 %v236
    %275 = vmatprep.subr.mxu0 0.0
    %276 = vmatpush1.msra.mxu0 %v237
    %277 = vmatprep.subr.mxu0 0.0
    %278 = vmatpush1.msra.mxu0 0.0
    %279 = vmatprep.subr.mxu0 0.0
    %280 = vmatpush1.msra.mxu0 0.0
    %281 = vmatprep.subr.mxu0 0.0
    %282 = vmatpush1.msra.mxu0 0.0
    %283 = vmatprep.subr.mxu0 0.0
    %284 = vmatpush1.msra.mxu0 0.0
    %285 = vmatprep.subr.mxu0 0.0
    %286 = vmatpush1.msra.mxu0 0.0
    %287 = vmatprep.subr.mxu0 0.0
    %288 = vmatpush1.msra.mxu0 0.0
    %289 = vmatprep.subr.mxu0 0.0
    %290 = vmatpush1.msra.mxu0 0.0
    %291 = vmatprep.subr.mxu0 0.0
    %292 = vmatpush1.msra.mxu0 0.0
    %293 = vmatprep.subr.mxu0 0.0
    %294 = vmatpush1.msra.mxu0 0.0
    %295 = vmatprep.subr.mxu0 0.0
    %296 = vmatpush1.msra.mxu0 0.0
    %297 = vmatprep.subr.mxu0 0.0
    %298 = vmatpush1.msra.mxu0 0.0
    %299 = vmatprep.subr.mxu0 0.0
    %300 = vmatpush1.msra.mxu0 0.0
    %301 = vmatprep.subr.mxu0 0.0
    %302 = vmatpush1.msra.mxu0 0.0
    %303 = vmatprep.subr.mxu0 0.0
    %304 = vmatpush1.msra.mxu0 0.0
    %305 = vmatprep.subr.mxu0 0.0
    %306 = vmatpush1.msra.mxu0 0.0
    %307 = vmatprep.subr.mxu0 0.0
    %308 = vmatpush1.msra.mxu0 0.0
    %309 = vmatprep.subr.mxu0 0.0
    %310 = vmatpush1.msra.mxu0 0.0
    %311 = vmatprep.subr.mxu0 0.0
    %312 = vmatpush1.msra.mxu0 0.0
    %313 = vmatprep.subr.mxu0 0.0
    %314 = vmatpush1.msra.mxu0 0.0
    %315 = vmatprep.subr.mxu0 0.0
    %316 = vmatpush1.msra.mxu0 0.0
    %317 = vmatprep.subr.mxu0 0.0
    %318 = vmatpush1.msra.mxu0 0.0
    %319 = vmatprep.subr.mxu0 0.0
    %320 = vmatpush1.msra.mxu0 0.0
    %321 = vmatprep.subr.mxu0 0.0
    %322 = vmatpush1.msra.mxu0 0.0
    %323 = vmatprep.subr.mxu0 0.0
    %324 = vmatpush1.msra.mxu0 0.0
    %325 = vmatprep.subr.mxu0 0.0
    %326 = vmatpush1.msra.mxu0 0.0
    %327 = vmatprep.subr.mxu0 0.0
    %328 = vmatpush1.msra.mxu0 0.0
    %329 = vmatprep.subr.mxu0 0.0
    %330 = vmatpush1.msra.mxu0 0.0
    %331 = vmatprep.subr.mxu0 0.0
    %332 = vmatpush1.msra.mxu0 0.0
    %333 = vmatprep.mubr.f32.mxu0 0.0
    %334 = vmatmul.mubr.f32.gmra.mrb[0].mxu0 %v246
    %v335 = vpop.f32.mrb[0].mxu0
    %v336 = vadd.f32 %v243, %v335
    %v337 = vpop.f32.mrb[0].mxu0
    %338 = vmatprep.mubr.f32.mxu0 0.0
    %339 = vmatmul.mubr.f32.gmra.mrb[0].mxu0 %v249
    %v340 = vpop.f32.mrb[0].mxu0
    %v341 = vadd.f32 %v243, %v340
    %v342 = vpop.f32.mrb[0].mxu0
    %343 = vmatprep.mubr.f32.mxu0 0.0
    %344 = vmatmul.mubr.f32.gmra.mrb[0].mxu0 %v252
    %v345 = vpop.f32.mrb[0].mxu0
    %v346 = vadd.f32 %v243, %v345
    %v347 = vpop.f32.mrb[0].mxu0
    %348 = vmatprep.mubr.f32.mxu0 0.0
    %349 = vmatmul.mubr.f32.gmra.mrb[0].mxu0 %v255
    %v350 = vpop.f32.mrb[0].mxu0
    %v351 = vadd.f32 %v243, %v350
    %v352 = vpop.f32.mrb[0].mxu0
    %353 = vmatprep.mubr.f32.mxu0 0.0
    %354 = vmatmul.mubr.f32.gmra.mrb[0].mxu0 %v258
    %v355 = vpop.f32.mrb[0].mxu0
    %v356 = vadd.f32 %v243, %v355
    %v357 = vpop.f32.mrb[0].mxu0
    %358 = vmatprep.mubr.f32.mxu0 0.0
    %359 = vmatmul.mubr.f32.gmra.mrb[0].mxu0 %v261
    %v360 = vpop.f32.mrb[0].mxu0
    %v361 = vadd.f32 %v243, %v360
    %v362 = vpop.f32.mrb[0].mxu0
    %363 = vmatprep.mubr.f32.mxu0 0.0
    %364 = vmatmul.mubr.f32.gmra.mrb[0].mxu0 %v264
    %v365 = vpop.f32.mrb[0].mxu0
    %v366 = vadd.f32 %v243, %v365
    %v367 = vpop.f32.mrb[0].mxu0
    %368 = vmatprep.mubr.f32.mxu0 0.0
    %369 = vmatmul.mubr.f32.gmra.mrb[0].mxu0 %v267
    %v370 = vpop.f32.mrb[0].mxu0
    %v371 = vadd.f32 %v243, %v370
    %v372 = vpop.f32.mrb[0].mxu0
    %373 = vdwg.mxu0
    %v375 = vcombine.high %v231, %v231
    %v377 = vunpack.c.l.s4 1966171168
    %v378 = vunpack.c.0.s8 %v377
    %v379 = vlaneseq
    %v380 = vshrl.u32 %v379, 7
    %v381 = vsub.s32 %v378, %v380
    %v382 = vrot.slane %v231, %v381
    %v384 = vunpack.c.l.s4 1966171168
    %v385 = vunpack.c.0.s8 %v384
    %v386 = vlaneseq
    %v387 = vshrl.u32 %v386, 7
    %v388 = vsub.s32 %v385, %v387
    %v389 = vrot.slane %v375, %v388
    %v390 = vcombine.high %v382, %v382
    %v391 = vcombine.high %v389, %v389
    %v393 = vunpack.c.l.s4 1966171168
    %v394 = vunpack.c.0.s8 %v393
    %v395 = vlaneseq
    %v396 = vshrl.u32 %v395, 7
    %v397 = vsub.s32 %v394, %v396
    %v398 = vrot.slane %v382, %v397
    %v400 = vunpack.c.l.s4 1966171168
    %v401 = vunpack.c.0.s8 %v400
    %v402 = vlaneseq
    %v403 = vshrl.u32 %v402, 7
    %v404 = vsub.s32 %v401, %v403
    %v405 = vrot.slane %v389, %v404
    %v407 = vunpack.c.l.s4 1966171168
    %v408 = vunpack.c.0.s8 %v407
    %v409 = vlaneseq
    %v410 = vshrl.u32 %v409, 7
    %v411 = vsub.s32 %v408, %v410
    %v412 = vrot.slane %v390, %v411
    %v414 = vunpack.c.l.s4 1966171168
    %v415 = vunpack.c.0.s8 %v414
    %v416 = vlaneseq
    %v417 = vshrl.u32 %v416, 7
    %v418 = vsub.s32 %v415, %v417
    %v419 = vrot.slane %v391, %v418
    %v420 = vcombine.high %v398, %v398
    %v421 = vcombine.high %v405, %v405
    %v422 = vcombine.high %v412, %v412
    %v423 = vcombine.high %v419, %v419
    %v424 = vlaneseq
    %v425 = vshrl.u32 %v424, 7
    %v426 = vsub.s32 0, %v425
    %v427 = vrot.slane %v398, %v426
    %v428 = vlaneseq
    %v429 = vshrl.u32 %v428, 7
    %v430 = vsub.s32 0, %v429
    %v431 = vrot.slane %v412, %v430
    %v432 = vlaneseq
    %v433 = vshrl.u32 %v432, 7
    %v434 = vsub.s32 0, %v433
    %v435 = vrot.slane %v420, %v434
    %v436 = vlaneseq
    %v437 = vshrl.u32 %v436, 7
    %v438 = vsub.s32 0, %v437
    %v439 = vrot.slane %v422, %v438
    %v440 = vlaneseq
    %v441 = vshrl.u32 %v440, 7
    %v442 = vsub.s32 0, %v441
    %v443 = vrot.slane %v405, %v442
    %v444 = vlaneseq
    %v445 = vshrl.u32 %v444, 7
    %v446 = vsub.s32 0, %v445
    %v447 = vrot.slane %v419, %v446
    %v448 = vlaneseq
    %v449 = vshrl.u32 %v448, 7
    %v450 = vsub.s32 0, %v449
    %v451 = vrot.slane %v421, %v450
    %v452 = vlaneseq
    %v453 = vshrl.u32 %v452, 7
    %v454 = vsub.s32 0, %v453
    %v455 = vrot.slane %v423, %v454
    %v464 = vmul.f32 %v336, %v427
    %v465 = vmul.f32 %v341, %v431
    %v466 = vmul.f32 %v346, %v435
    %v467 = vmul.f32 %v351, %v439
    %v468 = vmul.f32 %v356, %v443
    %v469 = vmul.f32 %v361, %v447
    %v470 = vmul.f32 %v366, %v451
    %v471 = vmul.f32 %v371, %v455
    %v472 = vld [vmem:[%s5] sm:$0xff]
    %v473 = vld [vmem:[%s5 + $0x8] sm:$0xff]
    %v474 = vld [vmem:[%s5 + $0x10] sm:$0xff]
    %v475 = vld [vmem:[%s5 + $0x18] sm:$0xff]
    %v477 = vsel %vm63, %v464, 0
    %v480 = vsel %vm63, %v465, 0
    %v483 = vsel %vm63, %v466, 0
    %v486 = vsel %vm63, %v467, 0
    %v489 = vsel %vm63, %v468, 0
    %v492 = vsel %vm63, %v469, 0
    %v495 = vsel %vm63, %v470, 0
    %v498 = vsel %vm63, %v471, 0
    %500 = vmatprep.subr.mxu0 0.0
    %501 = vmatpush1.msra.mxu0 %v472
    %502 = vmatprep.subr.mxu0 0.0
    %503 = vmatpush1.msra.mxu0 %v473
    %504 = vmatprep.subr.mxu0 0.0
    %505 = vmatpush1.msra.mxu0 %v474
    %506 = vmatprep.subr.mxu0 0.0
    %507 = vmatpush1.msra.mxu0 %v475
    %508 = vmatprep.subr.mxu0 0.0
    %509 = vmatpush1.msra.mxu0 0.0
    %510 = vmatprep.subr.mxu0 0.0
    %511 = vmatpush1.msra.mxu0 0.0
    %512 = vmatprep.subr.mxu0 0.0
    %513 = vmatpush1.msra.mxu0 0.0
    %514 = vmatprep.subr.mxu0 0.0
    %515 = vmatpush1.msra.mxu0 0.0
    %516 = vmatprep.subr.mxu0 0.0
    %517 = vmatpush1.msra.mxu0 0.0
    %518 = vmatprep.subr.mxu0 0.0
    %519 = vmatpush1.msra.mxu0 0.0
    %520 = vmatprep.subr.mxu0 0.0
    %521 = vmatpush1.msra.mxu0 0.0
    %522 = vmatprep.subr.mxu0 0.0
    %523 = vmatpush1.msra.mxu0 0.0
    %524 = vmatprep.subr.mxu0 0.0
    %525 = vmatpush1.msra.mxu0 0.0
    %526 = vmatprep.subr.mxu0 0.0
    %527 = vmatpush1.msra.mxu0 0.0
    %528 = vmatprep.subr.mxu0 0.0
    %529 = vmatpush1.msra.mxu0 0.0
    %530 = vmatprep.subr.mxu0 0.0
    %531 = vmatpush1.msra.mxu0 0.0
    %532 = vmatprep.subr.mxu0 0.0
    %533 = vmatpush1.msra.mxu0 0.0
    %534 = vmatprep.subr.mxu0 0.0
    %535 = vmatpush1.msra.mxu0 0.0
    %536 = vmatprep.subr.mxu0 0.0
    %537 = vmatpush1.msra.mxu0 0.0
    %538 = vmatprep.subr.mxu0 0.0
    %539 = vmatpush1.msra.mxu0 0.0
    %540 = vmatprep.subr.mxu0 0.0
    %541 = vmatpush1.msra.mxu0 0.0
    %542 = vmatprep.subr.mxu0 0.0
    %543 = vmatpush1.msra.mxu0 0.0
    %544 = vmatprep.subr.mxu0 0.0
    %545 = vmatpush1.msra.mxu0 0.0
    %546 = vmatprep.subr.mxu0 0.0
    %547 = vmatpush1.msra.mxu0 0.0
    %548 = vmatprep.subr.mxu0 0.0
    %549 = vmatpush1.msra.mxu0 0.0
    %550 = vmatprep.subr.mxu0 0.0
    %551 = vmatpush1.msra.mxu0 0.0
    %552 = vmatprep.subr.mxu0 0.0
    %553 = vmatpush1.msra.mxu0 0.0
    %554 = vmatprep.subr.mxu0 0.0
    %555 = vmatpush1.msra.mxu0 0.0
    %556 = vmatprep.subr.mxu0 0.0
    %557 = vmatpush1.msra.mxu0 0.0
    %558 = vmatprep.subr.mxu0 0.0
    %559 = vmatpush1.msra.mxu0 0.0
    %560 = vmatprep.subr.mxu0 0.0
    %561 = vmatpush1.msra.mxu0 0.0
    %562 = vmatprep.subr.mxu0 0.0
    %563 = vmatpush1.msra.mxu0 0.0
    %564 = vmatprep.mubr.f32.mxu0 0.0
    %565 = vmatmul.mubr.f32.gmra.mrb[0].mxu0 %v477
    %v566 = vpop.f32.mrb[0].mxu0
    %v567 = vadd.f32 0.0, %v566
    %v568 = vpop.f32.mrb[0].mxu0
    %569 = vmatprep.mubr.f32.mxu0 0.0
    %570 = vmatmul.mubr.f32.gmra.mrb[0].mxu0 %v480
    %v571 = vpop.f32.mrb[0].mxu0
    %v572 = vadd.f32 0.0, %v571
    %v573 = vpop.f32.mrb[0].mxu0
    %574 = vmatprep.mubr.f32.mxu0 0.0
    %575 = vmatmul.mubr.f32.gmra.mrb[0].mxu0 %v483
    %v576 = vpop.f32.mrb[0].mxu0
    %v577 = vadd.f32 0.0, %v576
    %v578 = vpop.f32.mrb[0].mxu0
    %579 = vmatprep.mubr.f32.mxu0 0.0
    %580 = vmatmul.mubr.f32.gmra.mrb[0].mxu0 %v486
    %v581 = vpop.f32.mrb[0].mxu0
    %v582 = vadd.f32 0.0, %v581
    %v583 = vpop.f32.mrb[0].mxu0
    %584 = vmatprep.mubr.f32.mxu0 0.0
    %585 = vmatmul.mubr.f32.gmra.mrb[0].mxu0 %v489
    %v586 = vpop.f32.mrb[0].mxu0
    %v587 = vadd.f32 0.0, %v586
    %v588 = vpop.f32.mrb[0].mxu0
    %589 = vmatprep.mubr.f32.mxu0 0.0
    %590 = vmatmul.mubr.f32.gmra.mrb[0].mxu0 %v492
    %v591 = vpop.f32.mrb[0].mxu0
    %v592 = vadd.f32 0.0, %v591
    %v593 = vpop.f32.mrb[0].mxu0
    %594 = vmatprep.mubr.f32.mxu0 0.0
    %595 = vmatmul.mubr.f32.gmra.mrb[0].mxu0 %v495
    %v596 = vpop.f32.mrb[0].mxu0
    %v597 = vadd.f32 0.0, %v596
    %v598 = vpop.f32.mrb[0].mxu0
    %599 = vmatprep.mubr.f32.mxu0 0.0
    %600 = vmatmul.mubr.f32.gmra.mrb[0].mxu0 %v498
    %v601 = vpop.f32.mrb[0].mxu0
    %v602 = vadd.f32 0.0, %v601
    %v603 = vpop.f32.mrb[0].mxu0
    %604 = vdwg.mxu0
    %vm605 = vcmask 31744
    %v606 = vsel %vm605, %v567, -inf
    %v607 = vrot.slane %v606, 4
    %v608 = vmax.f32 %v606, %v607
    %v609 = vrot.slane %v608, 2
    %v610 = vmax.f32 %v608, %v609
    %v611 = vrot.slane %v610, 1
    %v612 = vmax.f32 %v610, %v611
    %v613 = vsel %vm605, %v572, -inf
    %v614 = vrot.slane %v613, 4
    %v615 = vmax.f32 %v613, %v614
    %v616 = vrot.slane %v615, 2
    %v617 = vmax.f32 %v615, %v616
    %v618 = vrot.slane %v617, 1
    %v619 = vmax.f32 %v617, %v618
    %v620 = vsel %vm605, %v577, -inf
    %v621 = vrot.slane %v620, 4
    %v622 = vmax.f32 %v620, %v621
    %v623 = vrot.slane %v622, 2
    %v624 = vmax.f32 %v622, %v623
    %v625 = vrot.slane %v624, 1
    %v626 = vmax.f32 %v624, %v625
    %v627 = vsel %vm605, %v582, -inf
    %v628 = vrot.slane %v627, 4
    %v629 = vmax.f32 %v627, %v628
    %v630 = vrot.slane %v629, 2
    %v631 = vmax.f32 %v629, %v630
    %v632 = vrot.slane %v631, 1
    %v633 = vmax.f32 %v631, %v632
    %v634 = vsel %vm605, %v587, -inf
    %v635 = vrot.slane %v634, 4
    %v636 = vmax.f32 %v634, %v635
    %v637 = vrot.slane %v636, 2
    %v638 = vmax.f32 %v636, %v637
    %v639 = vrot.slane %v638, 1
    %v640 = vmax.f32 %v638, %v639
    %v641 = vsel %vm605, %v592, -inf
    %v642 = vrot.slane %v641, 4
    %v643 = vmax.f32 %v641, %v642
    %v644 = vrot.slane %v643, 2
    %v645 = vmax.f32 %v643, %v644
    %v646 = vrot.slane %v645, 1
    %v647 = vmax.f32 %v645, %v646
    %v648 = vsel %vm605, %v597, -inf
    %v649 = vrot.slane %v648, 4
    %v650 = vmax.f32 %v648, %v649
    %v651 = vrot.slane %v650, 2
    %v652 = vmax.f32 %v650, %v651
    %v653 = vrot.slane %v652, 1
    %v654 = vmax.f32 %v652, %v653
    %v655 = vsel %vm605, %v602, -inf
    %v656 = vrot.slane %v655, 4
    %v657 = vmax.f32 %v655, %v656
    %v658 = vrot.slane %v657, 2
    %v659 = vmax.f32 %v657, %v658
    %v660 = vrot.slane %v659, 1
    %v661 = vmax.f32 %v659, %v660
    %v662 = vsub.f32 %v567, %v612
    %v663 = vsub.f32 %v572, %v619
    %v664 = vsub.f32 %v577, %v626
    %v665 = vsub.f32 %v582, %v633
    %v666 = vsub.f32 %v587, %v640
    %v667 = vsub.f32 %v592, %v647
    %v668 = vsub.f32 %v597, %v654
    %v669 = vsub.f32 %v602, %v661
    %v670 = vmul.f32 %v662, 1.442695
    %v671 = vpow.pop %v670
    %v672 = vmul.f32 %v663, 1.442695
    %v673 = vpow.pop %v672
    %v674 = vmul.f32 %v664, 1.442695
    %v675 = vpow.pop %v674
    %v676 = vmul.f32 %v665, 1.442695
    %v677 = vpow.pop %v676
    %v678 = vmul.f32 %v666, 1.442695
    %v679 = vpow.pop %v678
    %v680 = vmul.f32 %v667, 1.442695
    %v681 = vpow.pop %v680
    %v682 = vmul.f32 %v668, 1.442695
    %v683 = vpow.pop %v682
    %v684 = vmul.f32 %v669, 1.442695
    %v685 = vpow.pop %v684
    %v686 = vsel %vm605, %v671, 0.0
    %v687 = vrot.slane %v686, 4
    %v688 = vadd.f32 %v686, %v687
    %v689 = vrot.slane %v688, 2
    %v690 = vadd.f32 %v688, %v689
    %v691 = vrot.slane %v690, 1
    %v692 = vadd.f32 %v690, %v691
    %v693 = vsel %vm605, %v673, 0.0
    %v694 = vrot.slane %v693, 4
    %v695 = vadd.f32 %v693, %v694
    %v696 = vrot.slane %v695, 2
    %v697 = vadd.f32 %v695, %v696
    %v698 = vrot.slane %v697, 1
    %v699 = vadd.f32 %v697, %v698
    %v700 = vsel %vm605, %v675, 0.0
    %v701 = vrot.slane %v700, 4
    %v702 = vadd.f32 %v700, %v701
    %v703 = vrot.slane %v702, 2
    %v704 = vadd.f32 %v702, %v703
    %v705 = vrot.slane %v704, 1
    %v706 = vadd.f32 %v704, %v705
    %v707 = vsel %vm605, %v677, 0.0
    %v708 = vrot.slane %v707, 4
    %v709 = vadd.f32 %v707, %v708
    %v710 = vrot.slane %v709, 2
    %v711 = vadd.f32 %v709, %v710
    %v712 = vrot.slane %v711, 1
    %v713 = vadd.f32 %v711, %v712
    %v714 = vsel %vm605, %v679, 0.0
    %v715 = vrot.slane %v714, 4
    %v716 = vadd.f32 %v714, %v715
    %v717 = vrot.slane %v716, 2
    %v718 = vadd.f32 %v716, %v717
    %v719 = vrot.slane %v718, 1
    %v720 = vadd.f32 %v718, %v719
    %v721 = vsel %vm605, %v681, 0.0
    %v722 = vrot.slane %v721, 4
    %v723 = vadd.f32 %v721, %v722
    %v724 = vrot.slane %v723, 2
    %v725 = vadd.f32 %v723, %v724
    %v726 = vrot.slane %v725, 1
    %v727 = vadd.f32 %v725, %v726
    %v728 = vsel %vm605, %v683, 0.0
    %v729 = vrot.slane %v728, 4
    %v730 = vadd.f32 %v728, %v729
    %v731 = vrot.slane %v730, 2
    %v732 = vadd.f32 %v730, %v731
    %v733 = vrot.slane %v732, 1
    %v734 = vadd.f32 %v732, %v733
    %v735 = vsel %vm605, %v685, 0.0
    %v736 = vrot.slane %v735, 4
    %v737 = vadd.f32 %v735, %v736
    %v738 = vrot.slane %v737, 2
    %v739 = vadd.f32 %v737, %v738
    %v740 = vrot.slane %v739, 1
    %v741 = vadd.f32 %v739, %v740
    %v742 = vrcp.pop %v692
    %v743 = vmul.f32 %v671, %v742
    %v744 = vrcp.pop %v699
    %v745 = vmul.f32 %v673, %v744
    %v746 = vrcp.pop %v706
    %v747 = vmul.f32 %v675, %v746
    %v748 = vrcp.pop %v713
    %v749 = vmul.f32 %v677, %v748
    %v750 = vrcp.pop %v720
    %v751 = vmul.f32 %v679, %v750
    %v752 = vrcp.pop %v727
    %v753 = vmul.f32 %v681, %v752
    %v754 = vrcp.pop %v734
    %v755 = vmul.f32 %v683, %v754
    %v756 = vrcp.pop %v741
    %v757 = vmul.f32 %v685, %v756
    %v758 = vld [vmem:[%s6] sm:$0xf]
    %v760 = vsel %vm605, %v743, 0
    %v763 = vsel %vm605, %v745, 0
    %v766 = vsel %vm605, %v747, 0
    %v769 = vsel %vm605, %v749, 0
    %v772 = vsel %vm605, %v751, 0
    %v775 = vsel %vm605, %v753, 0
    %v778 = vsel %vm605, %v755, 0
    %v781 = vsel %vm605, %v757, 0
    %vm783 = vcmask 1043456
    %v785 = vsel %vm783, %v758, 0
    %787 = vmatprep.subr.mxu0 0.0
    %788 = vmatpush1.msra.mxu0 %v785
    %789 = vmatprep.subr.mxu0 0.0
    %790 = vmatpush1.msra.mxu0 0.0
    %791 = vmatprep.subr.mxu0 0.0
    %792 = vmatpush1.msra.mxu0 0.0
    %793 = vmatprep.subr.mxu0 0.0
    %794 = vmatpush1.msra.mxu0 0.0
    %795 = vmatprep.subr.mxu0 0.0
    %796 = vmatpush1.msra.mxu0 0.0
    %797 = vmatprep.subr.mxu0 0.0
    %798 = vmatpush1.msra.mxu0 0.0
    %799 = vmatprep.subr.mxu0 0.0
    %800 = vmatpush1.msra.mxu0 0.0
    %801 = vmatprep.subr.mxu0 0.0
    %802 = vmatpush1.msra.mxu0 0.0
    %803 = vmatprep.subr.mxu0 0.0
    %804 = vmatpush1.msra.mxu0 0.0
    %805 = vmatprep.subr.mxu0 0.0
    %806 = vmatpush1.msra.mxu0 0.0
    %807 = vmatprep.subr.mxu0 0.0
    %808 = vmatpush1.msra.mxu0 0.0
    %809 = vmatprep.subr.mxu0 0.0
    %810 = vmatpush1.msra.mxu0 0.0
    %811 = vmatprep.subr.mxu0 0.0
    %812 = vmatpush1.msra.mxu0 0.0
    %813 = vmatprep.subr.mxu0 0.0
    %814 = vmatpush1.msra.mxu0 0.0
    %815 = vmatprep.subr.mxu0 0.0
    %816 = vmatpush1.msra.mxu0 0.0
    %817 = vmatprep.subr.mxu0 0.0
    %818 = vmatpush1.msra.mxu0 0.0
    %819 = vmatprep.subr.mxu0 0.0
    %820 = vmatpush1.msra.mxu0 0.0
    %821 = vmatprep.subr.mxu0 0.0
    %822 = vmatpush1.msra.mxu0 0.0
    %823 = vmatprep.subr.mxu0 0.0
    %824 = vmatpush1.msra.mxu0 0.0
    %825 = vmatprep.subr.mxu0 0.0
    %826 = vmatpush1.msra.mxu0 0.0
    %827 = vmatprep.subr.mxu0 0.0
    %828 = vmatpush1.msra.mxu0 0.0
    %829 = vmatprep.subr.mxu0 0.0
    %830 = vmatpush1.msra.mxu0 0.0
    %831 = vmatprep.subr.mxu0 0.0
    %832 = vmatpush1.msra.mxu0 0.0
    %833 = vmatprep.subr.mxu0 0.0
    %834 = vmatpush1.msra.mxu0 0.0
    %835 = vmatprep.subr.mxu0 0.0
    %836 = vmatpush1.msra.mxu0 0.0
    %837 = vmatprep.subr.mxu0 0.0
    %838 = vmatpush1.msra.mxu0 0.0
    %839 = vmatprep.subr.mxu0 0.0
    %840 = vmatpush1.msra.mxu0 0.0
    %841 = vmatprep.subr.mxu0 0.0
    %842 = vmatpush1.msra.mxu0 0.0
    %843 = vmatprep.subr.mxu0 0.0
    %844 = vmatpush1.msra.mxu0 0.0
    %845 = vmatprep.subr.mxu0 0.0
    %846 = vmatpush1.msra.mxu0 0.0
    %847 = vmatprep.subr.mxu0 0.0
    %848 = vmatpush1.msra.mxu0 0.0
    %849 = vmatprep.subr.mxu0 0.0
    %850 = vmatpush1.msra.mxu0 0.0
    %851 = vmatprep.mubr.f32.mxu0 0.0
    %852 = vmatmul.mubr.f32.gmra.mrb[0].mxu0 %v760
    %v853 = vpop.f32.mrb[0].mxu0
    %v854 = vadd.f32 0.0, %v853
    %v855 = vpop.f32.mrb[0].mxu0
    %856 = vmatprep.mubr.f32.mxu0 0.0
    %857 = vmatmul.mubr.f32.gmra.mrb[0].mxu0 %v763
    %v858 = vpop.f32.mrb[0].mxu0
    %v859 = vadd.f32 0.0, %v858
    %v860 = vpop.f32.mrb[0].mxu0
    %861 = vmatprep.mubr.f32.mxu0 0.0
    %862 = vmatmul.mubr.f32.gmra.mrb[0].mxu0 %v766
    %v863 = vpop.f32.mrb[0].mxu0
    %v864 = vadd.f32 0.0, %v863
    %v865 = vpop.f32.mrb[0].mxu0
    %866 = vmatprep.mubr.f32.mxu0 0.0
    %867 = vmatmul.mubr.f32.gmra.mrb[0].mxu0 %v769
    %v868 = vpop.f32.mrb[0].mxu0
    %v869 = vadd.f32 0.0, %v868
    %v870 = vpop.f32.mrb[0].mxu0
    %871 = vmatprep.mubr.f32.mxu0 0.0
    %872 = vmatmul.mubr.f32.gmra.mrb[0].mxu0 %v772
    %v873 = vpop.f32.mrb[0].mxu0
    %v874 = vadd.f32 0.0, %v873
    %v875 = vpop.f32.mrb[0].mxu0
    %876 = vmatprep.mubr.f32.mxu0 0.0
    %877 = vmatmul.mubr.f32.gmra.mrb[0].mxu0 %v775
    %v878 = vpop.f32.mrb[0].mxu0
    %v879 = vadd.f32 0.0, %v878
    %v880 = vpop.f32.mrb[0].mxu0
    %881 = vmatprep.mubr.f32.mxu0 0.0
    %882 = vmatmul.mubr.f32.gmra.mrb[0].mxu0 %v778
    %v883 = vpop.f32.mrb[0].mxu0
    %v884 = vadd.f32 0.0, %v883
    %v885 = vpop.f32.mrb[0].mxu0
    %886 = vmatprep.mubr.f32.mxu0 0.0
    %887 = vmatmul.mubr.f32.gmra.mrb[0].mxu0 %v781
    %v888 = vpop.f32.mrb[0].mxu0
    %v889 = vadd.f32 0.0, %v888
    %v890 = vpop.f32.mrb[0].mxu0
    %891 = vdwg.mxu0
    %v892 = vmul.f32 %v854, %v55
    %v893 = vmul.f32 %v859, %v56
    %v894 = vmul.f32 %v864, %v57
    %v895 = vmul.f32 %v869, %v58
    %v896 = vmul.f32 %v874, %v59
    %v897 = vmul.f32 %v879, %v60
    %v898 = vmul.f32 %v884, %v61
    %v899 = vmul.f32 %v889, %v62
    %v900 = vsel %vm63, %v892, 0.0
    %v901 = vrot.slane %v900, 4
    %v902 = vadd.f32 %v900, %v901
    %v903 = vrot.slane %v902, 2
    %v904 = vadd.f32 %v902, %v903
    %v905 = vrot.slane %v904, 1
    %v906 = vadd.f32 %v904, %v905
    %v907 = vsel %vm63, %v893, 0.0
    %v908 = vrot.slane %v907, 4
    %v909 = vadd.f32 %v907, %v908
    %v910 = vrot.slane %v909, 2
    %v911 = vadd.f32 %v909, %v910
    %v912 = vrot.slane %v911, 1
    %v913 = vadd.f32 %v911, %v912
    %v914 = vsel %vm63, %v894, 0.0
    %v915 = vrot.slane %v914, 4
    %v916 = vadd.f32 %v914, %v915
    %v917 = vrot.slane %v916, 2
    %v918 = vadd.f32 %v916, %v917
    %v919 = vrot.slane %v918, 1
    %v920 = vadd.f32 %v918, %v919
    %v921 = vsel %vm63, %v895, 0.0
    %v922 = vrot.slane %v921, 4
    %v923 = vadd.f32 %v921, %v922
    %v924 = vrot.slane %v923, 2
    %v925 = vadd.f32 %v923, %v924
    %v926 = vrot.slane %v925, 1
    %v927 = vadd.f32 %v925, %v926
    %v928 = vsel %vm63, %v896, 0.0
    %v929 = vrot.slane %v928, 4
    %v930 = vadd.f32 %v928, %v929
    %v931 = vrot.slane %v930, 2
    %v932 = vadd.f32 %v930, %v931
    %v933 = vrot.slane %v932, 1
    %v934 = vadd.f32 %v932, %v933
    %v935 = vsel %vm63, %v897, 0.0
    %v936 = vrot.slane %v935, 4
    %v937 = vadd.f32 %v935, %v936
    %v938 = vrot.slane %v937, 2
    %v939 = vadd.f32 %v937, %v938
    %v940 = vrot.slane %v939, 1
    %v941 = vadd.f32 %v939, %v940
    %v942 = vsel %vm63, %v898, 0.0
    %v943 = vrot.slane %v942, 4
    %v944 = vadd.f32 %v942, %v943
    %v945 = vrot.slane %v944, 2
    %v946 = vadd.f32 %v944, %v945
    %v947 = vrot.slane %v946, 1
    %v948 = vadd.f32 %v946, %v947
    %v949 = vsel %vm63, %v899, 0.0
    %v950 = vrot.slane %v949, 4
    %v951 = vadd.f32 %v949, %v950
    %v952 = vrot.slane %v951, 2
    %v953 = vadd.f32 %v951, %v952
    %v954 = vrot.slane %v953, 1
    %v955 = vadd.f32 %v953, %v954
    %v964 = vsel %vm148, %v913, %v906
    %v965 = vsel %vm150, %v920, %v964
    %v966 = vsel %vm152, %v927, %v965
    %v967 = vsel %vm154, %v934, %v966
    %v968 = vsel %vm156, %v941, %v967
    %v969 = vsel %vm158, %v948, %v968
    %v970 = vsel %vm160, %v955, %v969
    %972 = vst.msk [vmem:[#allocation7] sm:$0xff] %vm63, %v970
    // Predicated region
    $region38: #{tpu_custom_call.1} parent=1 // pred_check
      _
    $region39: #{tpu_custom_call.1} parent=1 // pred_check_branch
      %974 = sbr.rel (0) target = $region41
    $region40: #{tpu_custom_call.1} parent=1 // pred_region
      %s976 = ssub.s32 128, 128
      %977 = vsyncadd [#allocation4], %s976
      %s979 = sshll.u32 [#allocation7], 4
      %s980 = int_to_ptr.vmem [resolvable:$true] %s979
      %982 = dma.vmem_to_hbm [thread:$0]  %s980, 128, %s7, [#allocation4]
    $region41: #{tpu_custom_call.1} parent=1 // pred_fallthru
      _
    // Predicated region
    $region42: #{tpu_custom_call.1} parent=1 // pred_check
      _
    $region43: #{tpu_custom_call.1} parent=1 // pred_check_branch
      %984 = sbr.rel (0) target = $region45
    $region44: #{tpu_custom_call.1} parent=1 // pred_region
      %985 = dma.done [#allocation4], 128
    $region45: #{tpu_custom_call.1} parent=1 // pred_fallthru
      _
    %986 = vsyncpa [#allocation3], 1
    %987 = vsyncpa [#allocation6], 1
    %988 = vsyncpa [#allocation4], 1

// kernel: tpu_custom_call.1
$region0: #{tpu_custom_call.1}
  #allocation0 [shape = 'u32[]', space=smem, size = 0x4, offset = 0x4, fixed_abs, tag = 'smem constant byte address 0x4 - core index']
  #allocation1 [shape = 'u32[144,128]{1,0:T(1,128)}', space=vmem, size = 0x12000, scoped, tag = 'internal scratch']
  %s0 = inlined_call_operand.hbm [shape: f32[8,8,32], index: 0, kind: input, shape index: {}]
  %s1 = inlined_call_operand.vmem [shape: f32[32,32], index: 1, kind: input, shape index: {}]
  %s2 = inlined_call_operand.vmem [shape: f32[1,32], index: 2, kind: input, shape index: {}]
  %s3 = inlined_call_operand.hbm [shape: f32[32,32], index: 3, kind: input, shape index: {}]
  %s4 = inlined_call_operand.vmem [shape: f32[1,32], index: 4, kind: input, shape index: {}]
  %s5 = inlined_call_operand.vmem [shape: f32[32,4], index: 5, kind: input, shape index: {}]
  %s6 = inlined_call_operand.vmem [shape: f32[4,32], index: 6, kind: input, shape index: {}]
  %s7 = inlined_call_operand.hbm [shape: f32[8,32], index: 7, kind: output, shape index: {}]
  %s8 = sld [smem:[#allocation0]]
  $region46: #{tpu_custom_call.1} parent=0
    _
  %s10 = ssub.s32 1, %s8
  %s11 = scalar_select 0, %s10, %s8
  $region1: #{tpu_custom_call.1} parent=0
    #allocation2 [shape = 'u8[32768]{0}', space=vmem, size = 0x8000, scoped, tag = 'input window, operand 0, single buffered']
    #allocation3 [shape = 's32[1]{0}', space=sflag, size = 0x4, scoped, tag = 'scoped memory for tpu_custom_call.1']
    #allocation4 [shape = 's32[1]{0}', space=sflag, size = 0x4, scoped, tag = 'scoped memory for tpu_custom_call.1']
    #allocation5 [shape = 'u8[16384]{0}', space=vmem, size = 0x4000, scoped, tag = 'input window, operand 3, single buffered']
    #allocation6 [shape = 's32[1]{0}', space=sflag, size = 0x4, scoped, tag = 'scoped memory for tpu_custom_call.1']
    #allocation7 [shape = 'u8[4096]{0}', space=vmem, size = 0x1000, scoped, tag = 'output window, operand 0, single buffered']
    %12 = vsyncpa [#allocation3], 0
    %13 = vsyncpa [#allocation6], 0
    %14 = vsyncpa [#allocation4], 0
    // Predicated region
    $region2: #{tpu_custom_call.1} parent=1 // pred_check
      _
    $region3: #{tpu_custom_call.1} parent=1 // pred_check_branch
      %16 = sbr.rel (0) target = $region5
    $region4: #{tpu_custom_call.1} parent=1 // pred_region
      %s18 = ssub.s32 1024, 1024
      %19 = vsyncadd [#allocation3], %s18
      %s20 = sshll.u32 [#allocation2], 4
      %s21 = int_to_ptr.vmem [resolvable:$true] %s20
      %26 = dma.hbm_to_vmem [thread:$0]  %s0, 1024, %s21, [#allocation3], 128, 128, 8
    $region5: #{tpu_custom_call.1} parent=1 // pred_fallthru
      _
    // Predicated region
    $region6: #{tpu_custom_call.1} parent=1 // pred_check
      _
    $region7: #{tpu_custom_call.1} parent=1 // pred_check_branch
      %28 = sbr.rel (0) target = $region9
    $region8: #{tpu_custom_call.1} parent=1 // pred_region
      _
    $region9: #{tpu_custom_call.1} parent=1 // pred_fallthru
      _
    // Predicated region
    $region10: #{tpu_custom_call.1} parent=1 // pred_check
      _
    $region11: #{tpu_custom_call.1} parent=1 // pred_check_branch
      %30 = sbr.rel (0) target = $region13
    $region12: #{tpu_custom_call.1} parent=1 // pred_region
      _
    $region13: #{tpu_custom_call.1} parent=1 // pred_fallthru
      _
    // Predicated region
    $region14: #{tpu_custom_call.1} parent=1 // pred_check
      _
    $region15: #{tpu_custom_call.1} parent=1 // pred_check_branch
      %32 = sbr.rel (0) target = $region17
    $region16: #{tpu_custom_call.1} parent=1 // pred_region
      %s34 = ssub.s32 512, 512
      %35 = vsyncadd [#allocation6], %s34
      %s36 = sshll.u32 [#allocation5], 4
      %s37 = int_to_ptr.vmem [resolvable:$true] %s36
      %42 = dma.hbm_to_vmem [thread:$0]  %s3, 512, %s37, [#allocation6], 128, 128, 8
    $region17: #{tpu_custom_call.1} parent=1 // pred_fallthru
      _
    // Predicated region
    $region18: #{tpu_custom_call.1} parent=1 // pred_check
      _
    $region19: #{tpu_custom_call.1} parent=1 // pred_check_branch
      %44 = sbr.rel (0) target = $region21
    $region20: #{tpu_custom_call.1} parent=1 // pred_region
      _
    $region21: #{tpu_custom_call.1} parent=1 // pred_fallthru
      _
    // Predicated region
    $region22: #{tpu_custom_call.1} parent=1 // pred_check
      _
    $region23: #{tpu_custom_call.1} parent=1 // pred_check_branch
      %46 = sbr.rel (0) target = $region25
    $region24: #{tpu_custom_call.1} parent=1 // pred_region
      _
    $region25: #{tpu_custom_call.1} parent=1 // pred_fallthru
      _
    // Predicated region
    $region26: #{tpu_custom_call.1} parent=1 // pred_check
      _
    $region27: #{tpu_custom_call.1} parent=1 // pred_check_branch
      %48 = sbr.rel (0) target = $region29
    $region28: #{tpu_custom_call.1} parent=1 // pred_region
      _
    $region29: #{tpu_custom_call.1} parent=1 // pred_fallthru
      _
    // Predicated region
    $region30: #{tpu_custom_call.1} parent=1 // pred_check
      _
    $region31: #{tpu_custom_call.1} parent=1 // pred_check_branch
      %50 = sbr.rel (0) target = $region33
    $region32: #{tpu_custom_call.1} parent=1 // pred_region
      %51 = dma.done [#allocation3], 1024
    $region33: #{tpu_custom_call.1} parent=1 // pred_fallthru
      _
    // Predicated region
    $region34: #{tpu_custom_call.1} parent=1 // pred_check
      _
    $region35: #{tpu_custom_call.1} parent=1 // pred_check_branch
      %53 = sbr.rel (0) target = $region37
    $region36: #{tpu_custom_call.1} parent=1 // pred_region
      %54 = dma.done [#allocation6], 512
    $region37: #{tpu_custom_call.1} parent=1 // pred_fallthru
      _
    %v55 = vld [vmem:[#allocation2] sm:$0xff]
    %v56 = vld [vmem:[#allocation2 + $0x8] sm:$0xff]
    %v57 = vld [vmem:[#allocation2 + $0x10] sm:$0xff]
    %v58 = vld [vmem:[#allocation2 + $0x18] sm:$0xff]
    %v59 = vld [vmem:[#allocation2 + $0x20] sm:$0xff]
    %v60 = vld [vmem:[#allocation2 + $0x28] sm:$0xff]
    %v61 = vld [vmem:[#allocation2 + $0x30] sm:$0xff]
    %v62 = vld [vmem:[#allocation2 + $0x38] sm:$0xff]
    %vm63 = vcmask 261120
    %v64 = vsel %vm63, %v55, 0.0
    %v65 = vrot.slane %v64, 4
    %v66 = vadd.f32 %v64, %v65
    %v67 = vrot.slane %v66, 2
    %v68 = vadd.f32 %v66, %v67
    %v69 = vrot.slane %v68, 1
    %v70 = vadd.f32 %v68, %v69
    %v71 = vsel %vm63, %v56, 0.0
    %v72 = vrot.slane %v71, 4
    %v73 = vadd.f32 %v71, %v72
    %v74 = vrot.slane %v73, 2
    %v75 = vadd.f32 %v73, %v74
    %v76 = vrot.slane %v75, 1
    %v77 = vadd.f32 %v75, %v76
    %v78 = vsel %vm63, %v57, 0.0
    %v79 = vrot.slane %v78, 4
    %v80 = vadd.f32 %v78, %v79
    %v81 = vrot.slane %v80, 2
    %v82 = vadd.f32 %v80, %v81
    %v83 = vrot.slane %v82, 1
    %v84 = vadd.f32 %v82, %v83
    %v85 = vsel %vm63, %v58, 0.0
    %v86 = vrot.slane %v85, 4
    %v87 = vadd.f32 %v85, %v86
    %v88 = vrot.slane %v87, 2
    %v89 = vadd.f32 %v87, %v88
    %v90 = vrot.slane %v89, 1
    %v91 = vadd.f32 %v89, %v90
    %v92 = vsel %vm63, %v59, 0.0
    %v93 = vrot.slane %v92, 4
    %v94 = vadd.f32 %v92, %v93
    %v95 = vrot.slane %v94, 2
    %v96 = vadd.f32 %v94, %v95
    %v97 = vrot.slane %v96, 1
    %v98 = vadd.f32 %v96, %v97
    %v99 = vsel %vm63, %v60, 0.0
    %v100 = vrot.slane %v99, 4
    %v101 = vadd.f32 %v99, %v100
    %v102 = vrot.slane %v101, 2
    %v103 = vadd.f32 %v101, %v102
    %v104 = vrot.slane %v103, 1
    %v105 = vadd.f32 %v103, %v104
    %v106 = vsel %vm63, %v61, 0.0
    %v107 = vrot.slane %v106, 4
    %v108 = vadd.f32 %v106, %v107
    %v109 = vrot.slane %v108, 2
    %v110 = vadd.f32 %v108, %v109
    %v111 = vrot.slane %v110, 1
    %v112 = vadd.f32 %v110, %v111
    %v113 = vsel %vm63, %v62, 0.0
    %v114 = vrot.slane %v113, 4
    %v115 = vadd.f32 %v113, %v114
    %v116 = vrot.slane %v115, 2
    %v117 = vadd.f32 %v115, %v116
    %v118 = vrot.slane %v117, 1
    %v119 = vadd.f32 %v117, %v118
    %v120 = vrcp.pop 8.0
    %v121 = vmul.f32 %v70, %v120
    %v122 = vmul.f32 %v77, %v120
    %v123 = vmul.f32 %v84, %v120
    %v124 = vmul.f32 %v91, %v120
    %v125 = vmul.f32 %v98, %v120
    %v126 = vmul.f32 %v105, %v120
    %v127 = vmul.f32 %v112, %v120
    %v128 = vmul.f32 %v119, %v120
    %v129 = vld [vmem:[%s1] sm:$0xff]
    %v130 = vld [vmem:[%s1 + $0x8] sm:$0xff]
    %v131 = vld [vmem:[%s1 + $0x10] sm:$0xff]
    %v132 = vld [vmem:[%s1 + $0x18] sm:$0xff]
    %v133 = vld [vmem:[%s2] sm:$0x1]
    %v135 = vlaneseq
    %v136 = vshrl.u32 %v135, 7
    %v137 = vsub.s32 0, %v136
    %v138 = vrot.slane %v133, %v137
    %vm148 = vcmask 1041409
    %v149 = vsel %vm148, %v122, %v121
    %vm150 = vcmask 1042434
    %v151 = vsel %vm150, %v123, %v149
    %vm152 = vcmask 1043459
    %v153 = vsel %vm152, %v124, %v151
    %vm154 = vcmask 1044484
    %v155 = vsel %vm154, %v125, %v153
    %vm156 = vcmask 1045509
    %v157 = vsel %vm156, %v126, %v155
    %vm158 = vcmask 1046534
    %v159 = vsel %vm158, %v127, %v157
    %vm160 = vcmask 1047559
    %v161 = vsel %vm160, %v128, %v159
    %v162 = vsel %vm63, %v161, 0
    %164 = vmatprep.subr.mxu0 0.0
    %165 = vmatpush1.msra.mxu0 %v129
    %166 = vmatprep.subr.mxu0 0.0
    %167 = vmatpush1.msra.mxu0 %v130
    %168 = vmatprep.subr.mxu0 0.0
    %169 = vmatpush1.msra.mxu0 %v131
    %170 = vmatprep.subr.mxu0 0.0
    %171 = vmatpush1.msra.mxu0 %v132
    %172 = vmatprep.subr.mxu0 0.0
    %173 = vmatpush1.msra.mxu0 0.0
    %174 = vmatprep.subr.mxu0 0.0
    %175 = vmatpush1.msra.mxu0 0.0
    %176 = vmatprep.subr.mxu0 0.0
    %177 = vmatpush1.msra.mxu0 0.0
    %178 = vmatprep.subr.mxu0 0.0
    %179 = vmatpush1.msra.mxu0 0.0
    %180 = vmatprep.subr.mxu0 0.0
    %181 = vmatpush1.msra.mxu0 0.0
    %182 = vmatprep.subr.mxu0 0.0
    %183 = vmatpush1.msra.mxu0 0.0
    %184 = vmatprep.subr.mxu0 0.0
    %185 = vmatpush1.msra.mxu0 0.0
    %186 = vmatprep.subr.mxu0 0.0
    %187 = vmatpush1.msra.mxu0 0.0
    %188 = vmatprep.subr.mxu0 0.0
    %189 = vmatpush1.msra.mxu0 0.0
    %190 = vmatprep.subr.mxu0 0.0
    %191 = vmatpush1.msra.mxu0 0.0
    %192 = vmatprep.subr.mxu0 0.0
    %193 = vmatpush1.msra.mxu0 0.0
    %194 = vmatprep.subr.mxu0 0.0
    %195 = vmatpush1.msra.mxu0 0.0
    %196 = vmatprep.subr.mxu0 0.0
    %197 = vmatpush1.msra.mxu0 0.0
    %198 = vmatprep.subr.mxu0 0.0
    %199 = vmatpush1.msra.mxu0 0.0
    %200 = vmatprep.subr.mxu0 0.0
    %201 = vmatpush1.msra.mxu0 0.0
    %202 = vmatprep.subr.mxu0 0.0
    %203 = vmatpush1.msra.mxu0 0.0
    %204 = vmatprep.subr.mxu0 0.0
    %205 = vmatpush1.msra.mxu0 0.0
    %206 = vmatprep.subr.mxu0 0.0
    %207 = vmatpush1.msra.mxu0 0.0
    %208 = vmatprep.subr.mxu0 0.0
    %209 = vmatpush1.msra.mxu0 0.0
    %210 = vmatprep.subr.mxu0 0.0
    %211 = vmatpush1.msra.mxu0 0.0
    %212 = vmatprep.subr.mxu0 0.0
    %213 = vmatpush1.msra.mxu0 0.0
    %214 = vmatprep.subr.mxu0 0.0
    %215 = vmatpush1.msra.mxu0 0.0
    %216 = vmatprep.subr.mxu0 0.0
    %217 = vmatpush1.msra.mxu0 0.0
    %218 = vmatprep.subr.mxu0 0.0
    %219 = vmatpush1.msra.mxu0 0.0
    %220 = vmatprep.subr.mxu0 0.0
    %221 = vmatpush1.msra.mxu0 0.0
    %222 = vmatprep.subr.mxu0 0.0
    %223 = vmatpush1.msra.mxu0 0.0
    %224 = vmatprep.subr.mxu0 0.0
    %225 = vmatpush1.msra.mxu0 0.0
    %226 = vmatprep.subr.mxu0 0.0
    %227 = vmatpush1.msra.mxu0 0.0
    %228 = vmatprep.mubr.f32.mxu0 0.0
    %229 = vmatmul.mubr.f32.gmra.mrb[0].mxu0 %v162
    %v230 = vpop.f32.mrb[0].mxu0
    %v231 = vadd.f32 %v138, %v230
    %v232 = vpop.f32.mrb[0].mxu0
    %233 = vdwg.mxu0
    %v234 = vld [vmem:[#allocation5] sm:$0xff]
    %v235 = vld [vmem:[#allocation5 + $0x8] sm:$0xff]
    %v236 = vld [vmem:[#allocation5 + $0x10] sm:$0xff]
    %v237 = vld [vmem:[#allocation5 + $0x18] sm:$0xff]
    %v238 = vld [vmem:[%s4] sm:$0x1]
    %v240 = vlaneseq
    %v241 = vshrl.u32 %v240, 7
    %v242 = vsub.s32 0, %v241
    %v243 = vrot.slane %v238, %v242
    %v246 = vsel %vm63, %v55, 0
    %v249 = vsel %vm63, %v56, 0
    %v252 = vsel %vm63, %v57, 0
    %v255 = vsel %vm63, %v58, 0
    %v258 = vsel %vm63, %v59, 0
    %v261 = vsel %vm63, %v60, 0
    %v264 = vsel %vm63, %v61, 0
    %v267 = vsel %vm63, %v62, 0
    %269 = vmatprep.subr.mxu0 0.0
    %270 = vmatpush1.msra.mxu0 %v234
    %271 = vmatprep.subr.mxu0 0.0
    %272 = vmatpush1.msra.mxu0 %v235
    %273 = vmatprep.subr.mxu0 0.0
    %274 = vmatpush1.msra.mxu0 %v236
    %275 = vmatprep.subr.mxu0 0.0
    %276 = vmatpush1.msra.mxu0 %v237
    %277 = vmatprep.subr.mxu0 0.0
    %278 = vmatpush1.msra.mxu0 0.0
    %279 = vmatprep.subr.mxu0 0.0
    %280 = vmatpush1.msra.mxu0 0.0
    %281 = vmatprep.subr.mxu0 0.0
    %282 = vmatpush1.msra.mxu0 0.0
    %283 = vmatprep.subr.mxu0 0.0
    %284 = vmatpush1.msra.mxu0 0.0
    %285 = vmatprep.subr.mxu0 0.0
    %286 = vmatpush1.msra.mxu0 0.0
    %287 = vmatprep.subr.mxu0 0.0
    %288 = vmatpush1.msra.mxu0 0.0
    %289 = vmatprep.subr.mxu0 0.0
    %290 = vmatpush1.msra.mxu0 0.0
    %291 = vmatprep.subr.mxu0 0.0
    %292 = vmatpush1.msra.mxu0 0.0
    %293 = vmatprep.subr.mxu0 0.0
    %294 = vmatpush1.msra.mxu0 0.0
    %295 = vmatprep.subr.mxu0 0.0
    %296 = vmatpush1.msra.mxu0 0.0
    %297 = vmatprep.subr.mxu0 0.0
    %298 = vmatpush1.msra.mxu0 0.0
    %299 = vmatprep.subr.mxu0 0.0
    %300 = vmatpush1.msra.mxu0 0.0
    %301 = vmatprep.subr.mxu0 0.0
    %302 = vmatpush1.msra.mxu0 0.0
    %303 = vmatprep.subr.mxu0 0.0
    %304 = vmatpush1.msra.mxu0 0.0
    %305 = vmatprep.subr.mxu0 0.0
    %306 = vmatpush1.msra.mxu0 0.0
    %307 = vmatprep.subr.mxu0 0.0
    %308 = vmatpush1.msra.mxu0 0.0
    %309 = vmatprep.subr.mxu0 0.0
    %310 = vmatpush1.msra.mxu0 0.0
    %311 = vmatprep.subr.mxu0 0.0
    %312 = vmatpush1.msra.mxu0 0.0
    %313 = vmatprep.subr.mxu0 0.0
    %314 = vmatpush1.msra.mxu0 0.0
    %315 = vmatprep.subr.mxu0 0.0
    %316 = vmatpush1.msra.mxu0 0.0
    %317 = vmatprep.subr.mxu0 0.0
    %318 = vmatpush1.msra.mxu0 0.0
    %319 = vmatprep.subr.mxu0 0.0
    %320 = vmatpush1.msra.mxu0 0.0
    %321 = vmatprep.subr.mxu0 0.0
    %322 = vmatpush1.msra.mxu0 0.0
    %323 = vmatprep.subr.mxu0 0.0
    %324 = vmatpush1.msra.mxu0 0.0
    %325 = vmatprep.subr.mxu0 0.0
    %326 = vmatpush1.msra.mxu0 0.0
    %327 = vmatprep.subr.mxu0 0.0
    %328 = vmatpush1.msra.mxu0 0.0
    %329 = vmatprep.subr.mxu0 0.0
    %330 = vmatpush1.msra.mxu0 0.0
    %331 = vmatprep.subr.mxu0 0.0
    %332 = vmatpush1.msra.mxu0 0.0
    %333 = vmatprep.mubr.f32.mxu0 0.0
    %334 = vmatmul.mubr.f32.gmra.mrb[0].mxu0 %v246
    %v335 = vpop.f32.mrb[0].mxu0
    %v336 = vadd.f32 %v243, %v335
    %v337 = vpop.f32.mrb[0].mxu0
    %338 = vmatprep.mubr.f32.mxu0 0.0
    %339 = vmatmul.mubr.f32.gmra.mrb[0].mxu0 %v249
    %v340 = vpop.f32.mrb[0].mxu0
    %v341 = vadd.f32 %v243, %v340
    %v342 = vpop.f32.mrb[0].mxu0
    %343 = vmatprep.mubr.f32.mxu0 0.0
    %344 = vmatmul.mubr.f32.gmra.mrb[0].mxu0 %v252
    %v345 = vpop.f32.mrb[0].mxu0
    %v346 = vadd.f32 %v243, %v345
    %v347 = vpop.f32.mrb[0].mxu0
    %348 = vmatprep.mubr.f32.mxu0 0.0
    %349 = vmatmul.mubr.f32.gmra.mrb[0].mxu0 %v255
    %v350 = vpop.f32.mrb[0].mxu0
    %v351 = vadd.f32 %v243, %v350
    %v352 = vpop.f32.mrb[0].mxu0
    %353 = vmatprep.mubr.f32.mxu0 0.0
    %354 = vmatmul.mubr.f32.gmra.mrb[0].mxu0 %v258
    %v355 = vpop.f32.mrb[0].mxu0
    %v356 = vadd.f32 %v243, %v355
    %v357 = vpop.f32.mrb[0].mxu0
    %358 = vmatprep.mubr.f32.mxu0 0.0
    %359 = vmatmul.mubr.f32.gmra.mrb[0].mxu0 %v261
    %v360 = vpop.f32.mrb[0].mxu0
    %v361 = vadd.f32 %v243, %v360
    %v362 = vpop.f32.mrb[0].mxu0
    %363 = vmatprep.mubr.f32.mxu0 0.0
    %364 = vmatmul.mubr.f32.gmra.mrb[0].mxu0 %v264
    %v365 = vpop.f32.mrb[0].mxu0
    %v366 = vadd.f32 %v243, %v365
    %v367 = vpop.f32.mrb[0].mxu0
    %368 = vmatprep.mubr.f32.mxu0 0.0
    %369 = vmatmul.mubr.f32.gmra.mrb[0].mxu0 %v267
    %v370 = vpop.f32.mrb[0].mxu0
    %v371 = vadd.f32 %v243, %v370
    %v372 = vpop.f32.mrb[0].mxu0
    %373 = vdwg.mxu0
    %v375 = vcombine.high %v231, %v231
    %v377 = vunpack.c.l.s4 1966171168
    %v378 = vunpack.c.0.s8 %v377
    %v379 = vlaneseq
    %v380 = vshrl.u32 %v379, 7
    %v381 = vsub.s32 %v378, %v380
    %v382 = vrot.slane %v231, %v381
    %v384 = vunpack.c.l.s4 1966171168
    %v385 = vunpack.c.0.s8 %v384
    %v386 = vlaneseq
    %v387 = vshrl.u32 %v386, 7
    %v388 = vsub.s32 %v385, %v387
    %v389 = vrot.slane %v375, %v388
    %v390 = vcombine.high %v382, %v382
    %v391 = vcombine.high %v389, %v389
    %v393 = vunpack.c.l.s4 1966171168
    %v394 = vunpack.c.0.s8 %v393
    %v395 = vlaneseq
    %v396 = vshrl.u32 %v395, 7
    %v397 = vsub.s32 %v394, %v396
    %v398 = vrot.slane %v382, %v397
    %v400 = vunpack.c.l.s4 1966171168
    %v401 = vunpack.c.0.s8 %v400
    %v402 = vlaneseq
    %v403 = vshrl.u32 %v402, 7
    %v404 = vsub.s32 %v401, %v403
    %v405 = vrot.slane %v389, %v404
    %v407 = vunpack.c.l.s4 1966171168
    %v408 = vunpack.c.0.s8 %v407
    %v409 = vlaneseq
    %v410 = vshrl.u32 %v409, 7
    %v411 = vsub.s32 %v408, %v410
    %v412 = vrot.slane %v390, %v411
    %v414 = vunpack.c.l.s4 1966171168
    %v415 = vunpack.c.0.s8 %v414
    %v416 = vlaneseq
    %v417 = vshrl.u32 %v416, 7
    %v418 = vsub.s32 %v415, %v417
    %v419 = vrot.slane %v391, %v418
    %v420 = vcombine.high %v398, %v398
    %v421 = vcombine.high %v405, %v405
    %v422 = vcombine.high %v412, %v412
    %v423 = vcombine.high %v419, %v419
    %v424 = vlaneseq
    %v425 = vshrl.u32 %v424, 7
    %v426 = vsub.s32 0, %v425
    %v427 = vrot.slane %v398, %v426
    %v428 = vlaneseq
    %v429 = vshrl.u32 %v428, 7
    %v430 = vsub.s32 0, %v429
    %v431 = vrot.slane %v412, %v430
    %v432 = vlaneseq
    %v433 = vshrl.u32 %v432, 7
    %v434 = vsub.s32 0, %v433
    %v435 = vrot.slane %v420, %v434
    %v436 = vlaneseq
    %v437 = vshrl.u32 %v436, 7
    %v438 = vsub.s32 0, %v437
    %v439 = vrot.slane %v422, %v438
    %v440 = vlaneseq
    %v441 = vshrl.u32 %v440, 7
    %v442 = vsub.s32 0, %v441
    %v443 = vrot.slane %v405, %v442
    %v444 = vlaneseq
    %v445 = vshrl.u32 %v444, 7
    %v446 = vsub.s32 0, %v445
    %v447 = vrot.slane %v419, %v446
    %v448 = vlaneseq
    %v449 = vshrl.u32 %v448, 7
    %v450 = vsub.s32 0, %v449
    %v451 = vrot.slane %v421, %v450
    %v452 = vlaneseq
    %v453 = vshrl.u32 %v452, 7
    %v454 = vsub.s32 0, %v453
    %v455 = vrot.slane %v423, %v454
    %v464 = vmul.f32 %v336, %v427
    %v465 = vmul.f32 %v341, %v431
    %v466 = vmul.f32 %v346, %v435
    %v467 = vmul.f32 %v351, %v439
    %v468 = vmul.f32 %v356, %v443
    %v469 = vmul.f32 %v361, %v447
    %v470 = vmul.f32 %v366, %v451
    %v471 = vmul.f32 %v371, %v455
    %v472 = vld [vmem:[%s5] sm:$0xff]
    %v473 = vld [vmem:[%s5 + $0x8] sm:$0xff]
    %v474 = vld [vmem:[%s5 + $0x10] sm:$0xff]
    %v475 = vld [vmem:[%s5 + $0x18] sm:$0xff]
    %v477 = vsel %vm63, %v464, 0
    %v480 = vsel %vm63, %v465, 0
    %v483 = vsel %vm63, %v466, 0
    %v486 = vsel %vm63, %v467, 0
    %v489 = vsel %vm63, %v468, 0
    %v492 = vsel %vm63, %v469, 0
    %v495 = vsel %vm63, %v470, 0
    %v498 = vsel %vm63, %v471, 0
    %500 = vmatprep.subr.mxu0 0.0
    %501 = vmatpush1.msra.mxu0 %v472
    %502 = vmatprep.subr.mxu0 0.0
    %503 = vmatpush1.msra.mxu0 %v473
    %504 = vmatprep.subr.mxu0 0.0
    %505 = vmatpush1.msra.mxu0 %v474
    %506 = vmatprep.subr.mxu0 0.0
    %507 = vmatpush1.msra.mxu0 %v475
    %508 = vmatprep.subr.mxu0 0.0
    %509 = vmatpush1.msra.mxu0 0.0
    %510 = vmatprep.subr.mxu0 0.0
    %511 = vmatpush1.msra.mxu0 0.0
    %512 = vmatprep.subr.mxu0 0.0
    %513 = vmatpush1.msra.mxu0 0.0
    %514 = vmatprep.subr.mxu0 0.0
    %515 = vmatpush1.msra.mxu0 0.0
    %516 = vmatprep.subr.mxu0 0.0
    %517 = vmatpush1.msra.mxu0 0.0
    %518 = vmatprep.subr.mxu0 0.0
    %519 = vmatpush1.msra.mxu0 0.0
    %520 = vmatprep.subr.mxu0 0.0
    %521 = vmatpush1.msra.mxu0 0.0
    %522 = vmatprep.subr.mxu0 0.0
    %523 = vmatpush1.msra.mxu0 0.0
    %524 = vmatprep.subr.mxu0 0.0
    %525 = vmatpush1.msra.mxu0 0.0
    %526 = vmatprep.subr.mxu0 0.0
    %527 = vmatpush1.msra.mxu0 0.0
    %528 = vmatprep.subr.mxu0 0.0
    %529 = vmatpush1.msra.mxu0 0.0
    %530 = vmatprep.subr.mxu0 0.0
    %531 = vmatpush1.msra.mxu0 0.0
    %532 = vmatprep.subr.mxu0 0.0
    %533 = vmatpush1.msra.mxu0 0.0
    %534 = vmatprep.subr.mxu0 0.0
    %535 = vmatpush1.msra.mxu0 0.0
    %536 = vmatprep.subr.mxu0 0.0
    %537 = vmatpush1.msra.mxu0 0.0
    %538 = vmatprep.subr.mxu0 0.0
    %539 = vmatpush1.msra.mxu0 0.0
    %540 = vmatprep.subr.mxu0 0.0
    %541 = vmatpush1.msra.mxu0 0.0
    %542 = vmatprep.subr.mxu0 0.0
    %543 = vmatpush1.msra.mxu0 0.0
    %544 = vmatprep.subr.mxu0 0.0
    %545 = vmatpush1.msra.mxu0 0.0
    %546 = vmatprep.subr.mxu0 0.0
    %547 = vmatpush1.msra.mxu0 0.0
    %548 = vmatprep.subr.mxu0 0.0
    %549 = vmatpush1.msra.mxu0 0.0
    %550 = vmatprep.subr.mxu0 0.0
    %551 = vmatpush1.msra.mxu0 0.0
    %552 = vmatprep.subr.mxu0 0.0
    %553 = vmatpush1.msra.mxu0 0.0
    %554 = vmatprep.subr.mxu0 0.0
    %555 = vmatpush1.msra.mxu0 0.0
    %556 = vmatprep.subr.mxu0 0.0
    %557 = vmatpush1.msra.mxu0 0.0
    %558 = vmatprep.subr.mxu0 0.0
    %559 = vmatpush1.msra.mxu0 0.0
    %560 = vmatprep.subr.mxu0 0.0
    %561 = vmatpush1.msra.mxu0 0.0
    %562 = vmatprep.subr.mxu0 0.0
    %563 = vmatpush1.msra.mxu0 0.0
    %564 = vmatprep.mubr.f32.mxu0 0.0
    %565 = vmatmul.mubr.f32.gmra.mrb[0].mxu0 %v477
    %v566 = vpop.f32.mrb[0].mxu0
    %v567 = vadd.f32 0.0, %v566
    %v568 = vpop.f32.mrb[0].mxu0
    %569 = vmatprep.mubr.f32.mxu0 0.0
    %570 = vmatmul.mubr.f32.gmra.mrb[0].mxu0 %v480
    %v571 = vpop.f32.mrb[0].mxu0
    %v572 = vadd.f32 0.0, %v571
    %v573 = vpop.f32.mrb[0].mxu0
    %574 = vmatprep.mubr.f32.mxu0 0.0
    %575 = vmatmul.mubr.f32.gmra.mrb[0].mxu0 %v483
    %v576 = vpop.f32.mrb[0].mxu0
    %v577 = vadd.f32 0.0, %v576
    %v578 = vpop.f32.mrb[0].mxu0
    %579 = vmatprep.mubr.f32.mxu0 0.0
    %580 = vmatmul.mubr.f32.gmra.mrb[0].mxu0 %v486
    %v581 = vpop.f32.mrb[0].mxu0
    %v582 = vadd.f32 0.0, %v581
    %v583 = vpop.f32.mrb[0].mxu0
    %584 = vmatprep.mubr.f32.mxu0 0.0
    %585 = vmatmul.mubr.f32.gmra.mrb[0].mxu0 %v489
    %v586 = vpop.f32.mrb[0].mxu0
    %v587 = vadd.f32 0.0, %v586
    %v588 = vpop.f32.mrb[0].mxu0
    %589 = vmatprep.mubr.f32.mxu0 0.0
    %590 = vmatmul.mubr.f32.gmra.mrb[0].mxu0 %v492
    %v591 = vpop.f32.mrb[0].mxu0
    %v592 = vadd.f32 0.0, %v591
    %v593 = vpop.f32.mrb[0].mxu0
    %594 = vmatprep.mubr.f32.mxu0 0.0
    %595 = vmatmul.mubr.f32.gmra.mrb[0].mxu0 %v495
    %v596 = vpop.f32.mrb[0].mxu0
    %v597 = vadd.f32 0.0, %v596
    %v598 = vpop.f32.mrb[0].mxu0
    %599 = vmatprep.mubr.f32.mxu0 0.0
    %600 = vmatmul.mubr.f32.gmra.mrb[0].mxu0 %v498
    %v601 = vpop.f32.mrb[0].mxu0
    %v602 = vadd.f32 0.0, %v601
    %v603 = vpop.f32.mrb[0].mxu0
    %604 = vdwg.mxu0
    %vm605 = vcmask 31744
    %v606 = vsel %vm605, %v567, -inf
    %v607 = vrot.slane %v606, 4
    %v608 = vmax.f32 %v606, %v607
    %v609 = vrot.slane %v608, 2
    %v610 = vmax.f32 %v608, %v609
    %v611 = vrot.slane %v610, 1
    %v612 = vmax.f32 %v610, %v611
    %v613 = vsel %vm605, %v572, -inf
    %v614 = vrot.slane %v613, 4
    %v615 = vmax.f32 %v613, %v614
    %v616 = vrot.slane %v615, 2
    %v617 = vmax.f32 %v615, %v616
    %v618 = vrot.slane %v617, 1
    %v619 = vmax.f32 %v617, %v618
    %v620 = vsel %vm605, %v577, -inf
    %v621 = vrot.slane %v620, 4
    %v622 = vmax.f32 %v620, %v621
    %v623 = vrot.slane %v622, 2
    %v624 = vmax.f32 %v622, %v623
    %v625 = vrot.slane %v624, 1
    %v626 = vmax.f32 %v624, %v625
    %v627 = vsel %vm605, %v582, -inf
    %v628 = vrot.slane %v627, 4
    %v629 = vmax.f32 %v627, %v628
    %v630 = vrot.slane %v629, 2
    %v631 = vmax.f32 %v629, %v630
    %v632 = vrot.slane %v631, 1
    %v633 = vmax.f32 %v631, %v632
    %v634 = vsel %vm605, %v587, -inf
    %v635 = vrot.slane %v634, 4
    %v636 = vmax.f32 %v634, %v635
    %v637 = vrot.slane %v636, 2
    %v638 = vmax.f32 %v636, %v637
    %v639 = vrot.slane %v638, 1
    %v640 = vmax.f32 %v638, %v639
    %v641 = vsel %vm605, %v592, -inf
    %v642 = vrot.slane %v641, 4
    %v643 = vmax.f32 %v641, %v642
    %v644 = vrot.slane %v643, 2
    %v645 = vmax.f32 %v643, %v644
    %v646 = vrot.slane %v645, 1
    %v647 = vmax.f32 %v645, %v646
    %v648 = vsel %vm605, %v597, -inf
    %v649 = vrot.slane %v648, 4
    %v650 = vmax.f32 %v648, %v649
    %v651 = vrot.slane %v650, 2
    %v652 = vmax.f32 %v650, %v651
    %v653 = vrot.slane %v652, 1
    %v654 = vmax.f32 %v652, %v653
    %v655 = vsel %vm605, %v602, -inf
    %v656 = vrot.slane %v655, 4
    %v657 = vmax.f32 %v655, %v656
    %v658 = vrot.slane %v657, 2
    %v659 = vmax.f32 %v657, %v658
    %v660 = vrot.slane %v659, 1
    %v661 = vmax.f32 %v659, %v660
    %v662 = vsub.f32 %v567, %v612
    %v663 = vsub.f32 %v572, %v619
    %v664 = vsub.f32 %v577, %v626
    %v665 = vsub.f32 %v582, %v633
    %v666 = vsub.f32 %v587, %v640
    %v667 = vsub.f32 %v592, %v647
    %v668 = vsub.f32 %v597, %v654
    %v669 = vsub.f32 %v602, %v661
    %v670 = vmul.f32 %v662, 1.442695
    %v671 = vpow.pop %v670
    %v672 = vmul.f32 %v663, 1.442695
    %v673 = vpow.pop %v672
    %v674 = vmul.f32 %v664, 1.442695
    %v675 = vpow.pop %v674
    %v676 = vmul.f32 %v665, 1.442695
    %v677 = vpow.pop %v676
    %v678 = vmul.f32 %v666, 1.442695
    %v679 = vpow.pop %v678
    %v680 = vmul.f32 %v667, 1.442695
    %v681 = vpow.pop %v680
    %v682 = vmul.f32 %v668, 1.442695
    %v683 = vpow.pop %v682
    %v684 = vmul.f32 %v669, 1.442695
    %v685 = vpow.pop %v684
    %v686 = vsel %vm605, %v671, 0.0
    %v687 = vrot.slane %v686, 4
    %v688 = vadd.f32 %v686, %v687
    %v689 = vrot.slane %v688, 2
    %v690 = vadd.f32 %v688, %v689
    %v691 = vrot.slane %v690, 1
    %v692 = vadd.f32 %v690, %v691
    %v693 = vsel %vm605, %v673, 0.0
    %v694 = vrot.slane %v693, 4
    %v695 = vadd.f32 %v693, %v694
    %v696 = vrot.slane %v695, 2
    %v697 = vadd.f32 %v695, %v696
    %v698 = vrot.slane %v697, 1
    %v699 = vadd.f32 %v697, %v698
    %v700 = vsel %vm605, %v675, 0.0
    %v701 = vrot.slane %v700, 4
    %v702 = vadd.f32 %v700, %v701
    %v703 = vrot.slane %v702, 2
    %v704 = vadd.f32 %v702, %v703
    %v705 = vrot.slane %v704, 1
    %v706 = vadd.f32 %v704, %v705
    %v707 = vsel %vm605, %v677, 0.0
    %v708 = vrot.slane %v707, 4
    %v709 = vadd.f32 %v707, %v708
    %v710 = vrot.slane %v709, 2
    %v711 = vadd.f32 %v709, %v710
    %v712 = vrot.slane %v711, 1
    %v713 = vadd.f32 %v711, %v712
    %v714 = vsel %vm605, %v679, 0.0
    %v715 = vrot.slane %v714, 4
    %v716 = vadd.f32 %v714, %v715
    %v717 = vrot.slane %v716, 2
    %v718 = vadd.f32 %v716, %v717
    %v719 = vrot.slane %v718, 1
    %v720 = vadd.f32 %v718, %v719
    %v721 = vsel %vm605, %v681, 0.0
    %v722 = vrot.slane %v721, 4
    %v723 = vadd.f32 %v721, %v722
    %v724 = vrot.slane %v723, 2
    %v725 = vadd.f32 %v723, %v724
    %v726 = vrot.slane %v725, 1
    %v727 = vadd.f32 %v725, %v726
    %v728 = vsel %vm605, %v683, 0.0
    %v729 = vrot.slane %v728, 4
    %v730 = vadd.f32 %v728, %v729
    %v731 = vrot.slane %v730, 2
    %v732 = vadd.f32 %v730, %v731
    %v733 = vrot.slane %v732, 1
    %v734 = vadd.f32 %v732, %v733
    %v735 = vsel %vm605, %v685, 0.0
    %v736 = vrot.slane %v735, 4
    %v737 = vadd.f32 %v735, %v736
    %v738 = vrot.slane %v737, 2
    %v739 = vadd.f32 %v737, %v738
    %v740 = vrot.slane %v739, 1
    %v741 = vadd.f32 %v739, %v740
    %v742 = vrcp.pop %v692
    %v743 = vmul.f32 %v671, %v742
    %v744 = vrcp.pop %v699
    %v745 = vmul.f32 %v673, %v744
    %v746 = vrcp.pop %v706
    %v747 = vmul.f32 %v675, %v746
    %v748 = vrcp.pop %v713
    %v749 = vmul.f32 %v677, %v748
    %v750 = vrcp.pop %v720
    %v751 = vmul.f32 %v679, %v750
    %v752 = vrcp.pop %v727
    %v753 = vmul.f32 %v681, %v752
    %v754 = vrcp.pop %v734
    %v755 = vmul.f32 %v683, %v754
    %v756 = vrcp.pop %v741
    %v757 = vmul.f32 %v685, %v756
    %v758 = vld [vmem:[%s6] sm:$0xf]
    %v760 = vsel %vm605, %v743, 0
    %v763 = vsel %vm605, %v745, 0
    %v766 = vsel %vm605, %v747, 0
    %v769 = vsel %vm605, %v749, 0
    %v772 = vsel %vm605, %v751, 0
    %v775 = vsel %vm605, %v753, 0
    %v778 = vsel %vm605, %v755, 0
    %v781 = vsel %vm605, %v757, 0
    %vm783 = vcmask 1043456
    %v785 = vsel %vm783, %v758, 0
    %787 = vmatprep.subr.mxu0 0.0
    %788 = vmatpush1.msra.mxu0 %v785
    %789 = vmatprep.subr.mxu0 0.0
    %790 = vmatpush1.msra.mxu0 0.0
    %791 = vmatprep.subr.mxu0 0.0
    %792 = vmatpush1.msra.mxu0 0.0
    %793 = vmatprep.subr.mxu0 0.0
    %794 = vmatpush1.msra.mxu0 0.0
    %795 = vmatprep.subr.mxu0 0.0
    %796 = vmatpush1.msra.mxu0 0.0
    %797 = vmatprep.subr.mxu0 0.0
    %798 = vmatpush1.msra.mxu0 0.0
    %799 = vmatprep.subr.mxu0 0.0
    %800 = vmatpush1.msra.mxu0 0.0
    %801 = vmatprep.subr.mxu0 0.0
    %802 = vmatpush1.msra.mxu0 0.0
    %803 = vmatprep.subr.mxu0 0.0
    %804 = vmatpush1.msra.mxu0 0.0
    %805 = vmatprep.subr.mxu0 0.0
    %806 = vmatpush1.msra.mxu0 0.0
    %807 = vmatprep.subr.mxu0 0.0
    %808 = vmatpush1.msra.mxu0 0.0
    %809 = vmatprep.subr.mxu0 0.0
    %810 = vmatpush1.msra.mxu0 0.0
    %811 = vmatprep.subr.mxu0 0.0
    %812 = vmatpush1.msra.mxu0 0.0
    %813 = vmatprep.subr.mxu0 0.0
    %814 = vmatpush1.msra.mxu0 0.0
    %815 = vmatprep.subr.mxu0 0.0
    %816 = vmatpush1.msra.mxu0 0.0
    %817 = vmatprep.subr.mxu0 0.0
    %818 = vmatpush1.msra.mxu0 0.0
    %819 = vmatprep.subr.mxu0 0.0
    %820 = vmatpush1.msra.mxu0 0.0
    %821 = vmatprep.subr.mxu0 0.0
    %822 = vmatpush1.msra.mxu0 0.0
    %823 = vmatprep.subr.mxu0 0.0
    %824 = vmatpush1.msra.mxu0 0.0
    %825 = vmatprep.subr.mxu0 0.0
    %826 = vmatpush1.msra.mxu0 0.0
    %827 = vmatprep.subr.mxu0 0.0
    %828 = vmatpush1.msra.mxu0 0.0
    %829 = vmatprep.subr.mxu0 0.0
    %830 = vmatpush1.msra.mxu0 0.0
    %831 = vmatprep.subr.mxu0 0.0
    %832 = vmatpush1.msra.mxu0 0.0
    %833 = vmatprep.subr.mxu0 0.0
    %834 = vmatpush1.msra.mxu0 0.0
    %835 = vmatprep.subr.mxu0 0.0
    %836 = vmatpush1.msra.mxu0 0.0
    %837 = vmatprep.subr.mxu0 0.0
    %838 = vmatpush1.msra.mxu0 0.0
    %839 = vmatprep.subr.mxu0 0.0
    %840 = vmatpush1.msra.mxu0 0.0
    %841 = vmatprep.subr.mxu0 0.0
    %842 = vmatpush1.msra.mxu0 0.0
    %843 = vmatprep.subr.mxu0 0.0
    %844 = vmatpush1.msra.mxu0 0.0
    %845 = vmatprep.subr.mxu0 0.0
    %846 = vmatpush1.msra.mxu0 0.0
    %847 = vmatprep.subr.mxu0 0.0
    %848 = vmatpush1.msra.mxu0 0.0
    %849 = vmatprep.subr.mxu0 0.0
    %850 = vmatpush1.msra.mxu0 0.0
    %851 = vmatprep.mubr.f32.mxu0 0.0
    %852 = vmatmul.mubr.f32.gmra.mrb[0].mxu0 %v760
    %v853 = vpop.f32.mrb[0].mxu0
    %v854 = vadd.f32 0.0, %v853
    %v855 = vpop.f32.mrb[0].mxu0
    %856 = vmatprep.mubr.f32.mxu0 0.0
    %857 = vmatmul.mubr.f32.gmra.mrb[0].mxu0 %v763
    %v858 = vpop.f32.mrb[0].mxu0
    %v859 = vadd.f32 0.0, %v858
    %v860 = vpop.f32.mrb[0].mxu0
    %861 = vmatprep.mubr.f32.mxu0 0.0
    %862 = vmatmul.mubr.f32.gmra.mrb[0].mxu0 %v766
    %v863 = vpop.f32.mrb[0].mxu0
    %v864 = vadd.f32 0.0, %v863
    %v865 = vpop.f32.mrb[0].mxu0
    %866 = vmatprep.mubr.f32.mxu0 0.0
    %867 = vmatmul.mubr.f32.gmra.mrb[0].mxu0 %v769
    %v868 = vpop.f32.mrb[0].mxu0
    %v869 = vadd.f32 0.0, %v868
    %v870 = vpop.f32.mrb[0].mxu0
    %871 = vmatprep.mubr.f32.mxu0 0.0
    %872 = vmatmul.mubr.f32.gmra.mrb[0].mxu0 %v772
    %v873 = vpop.f32.mrb[0].mxu0
    %v874 = vadd.f32 0.0, %v873
    %v875 = vpop.f32.mrb[0].mxu0
    %876 = vmatprep.mubr.f32.mxu0 0.0
    %877 = vmatmul.mubr.f32.gmra.mrb[0].mxu0 %v775
    %v878 = vpop.f32.mrb[0].mxu0
    %v879 = vadd.f32 0.0, %v878
    %v880 = vpop.f32.mrb[0].mxu0
    %881 = vmatprep.mubr.f32.mxu0 0.0
    %882 = vmatmul.mubr.f32.gmra.mrb[0].mxu0 %v778
    %v883 = vpop.f32.mrb[0].mxu0
    %v884 = vadd.f32 0.0, %v883
    %v885 = vpop.f32.mrb[0].mxu0
    %886 = vmatprep.mubr.f32.mxu0 0.0
    %887 = vmatmul.mubr.f32.gmra.mrb[0].mxu0 %v781
    %v888 = vpop.f32.mrb[0].mxu0
    %v889 = vadd.f32 0.0, %v888
    %v890 = vpop.f32.mrb[0].mxu0
    %891 = vdwg.mxu0
    %v892 = vmul.f32 %v854, %v55
    %v893 = vmul.f32 %v859, %v56
    %v894 = vmul.f32 %v864, %v57
    %v895 = vmul.f32 %v869, %v58
    %v896 = vmul.f32 %v874, %v59
    %v897 = vmul.f32 %v879, %v60
    %v898 = vmul.f32 %v884, %v61
    %v899 = vmul.f32 %v889, %v62
    %v900 = vsel %vm63, %v892, 0.0
    %v901 = vrot.slane %v900, 4
    %v902 = vadd.f32 %v900, %v901
    %v903 = vrot.slane %v902, 2
    %v904 = vadd.f32 %v902, %v903
    %v905 = vrot.slane %v904, 1
    %v906 = vadd.f32 %v904, %v905
    %v907 = vsel %vm63, %v893, 0.0
    %v908 = vrot.slane %v907, 4
    %v909 = vadd.f32 %v907, %v908
    %v910 = vrot.slane %v909, 2
    %v911 = vadd.f32 %v909, %v910
    %v912 = vrot.slane %v911, 1
    %v913 = vadd.f32 %v911, %v912
    %v914 = vsel %vm63, %v894, 0.0
    %v915 = vrot.slane %v914, 4
    %v916 = vadd.f32 %v914, %v915
    %v917 = vrot.slane %v916, 2
    %v918 = vadd.f32 %v916, %v917
    %v919 = vrot.slane %v918, 1
    %v920 = vadd.f32 %v918, %v919
    %v921 = vsel %vm63, %v895, 0.0
    %v922 = vrot.slane %v921, 4
    %v923 = vadd.f32 %v921, %v922
    %v924 = vrot.slane %v923, 2
    %v925 = vadd.f32 %v923, %v924
    %v926 = vrot.slane %v925, 1
    %v927 = vadd.f32 %v925, %v926
    %v928 = vsel %vm63, %v896, 0.0
    %v929 = vrot.slane %v928, 4
    %v930 = vadd.f32 %v928, %v929
    %v931 = vrot.slane %v930, 2
    %v932 = vadd.f32 %v930, %v931
    %v933 = vrot.slane %v932, 1
    %v934 = vadd.f32 %v932, %v933
    %v935 = vsel %vm63, %v897, 0.0
    %v936 = vrot.slane %v935, 4
    %v937 = vadd.f32 %v935, %v936
    %v938 = vrot.slane %v937, 2
    %v939 = vadd.f32 %v937, %v938
    %v940 = vrot.slane %v939, 1
    %v941 = vadd.f32 %v939, %v940
    %v942 = vsel %vm63, %v898, 0.0
    %v943 = vrot.slane %v942, 4
    %v944 = vadd.f32 %v942, %v943
    %v945 = vrot.slane %v944, 2
    %v946 = vadd.f32 %v944, %v945
    %v947 = vrot.slane %v946, 1
    %v948 = vadd.f32 %v946, %v947
    %v949 = vsel %vm63, %v899, 0.0
    %v950 = vrot.slane %v949, 4
    %v951 = vadd.f32 %v949, %v950
    %v952 = vrot.slane %v951, 2
    %v953 = vadd.f32 %v951, %v952
    %v954 = vrot.slane %v953, 1
    %v955 = vadd.f32 %v953, %v954
    %v964 = vsel %vm148, %v913, %v906
    %v965 = vsel %vm150, %v920, %v964
    %v966 = vsel %vm152, %v927, %v965
    %v967 = vsel %vm154, %v934, %v966
    %v968 = vsel %vm156, %v941, %v967
    %v969 = vsel %vm158, %v948, %v968
    %v970 = vsel %vm160, %v955, %v969
    %972 = vst.msk [vmem:[#allocation7] sm:$0xff] %vm63, %v970
    // Predicated region
    $region38: #{tpu_custom_call.1} parent=1 // pred_check
      _
    $region39: #{tpu_custom_call.1} parent=1 // pred_check_branch
      %974 = sbr.rel (0) target = $region41
    $region40: #{tpu_custom_call.1} parent=1 // pred_region
      %s976 = ssub.s32 128, 128
      %977 = vsyncadd [#allocation4], %s976
      %s979 = sshll.u32 [#allocation7], 4
      %s980 = int_to_ptr.vmem [resolvable:$true] %s979
      %982 = dma.vmem_to_hbm [thread:$0]  %s980, 128, %s7, [#allocation4]
    $region41: #{tpu_custom_call.1} parent=1 // pred_fallthru
      _
    // Predicated region
    $region42: #{tpu_custom_call.1} parent=1 // pred_check
      _
    $region43: #{tpu_custom_call.1} parent=1 // pred_check_branch
      %984 = sbr.rel (0) target = $region45
    $region44: #{tpu_custom_call.1} parent=1 // pred_region
      %985 = dma.done [#allocation4], 128
    $region45: #{tpu_custom_call.1} parent=1 // pred_fallthru
      _
    %986 = vsyncpa [#allocation3], 1
    %987 = vsyncpa [#allocation6], 1
    %988 = vsyncpa [#allocation4], 1

</llo_original>
